<compile_context>
chip_gen: v6e
topology: v6e:2x2x1
jax: 0.10.0
libtpu: 0.0.40
codegen_flags: <defaults>
</compile_context>

<pallas_src>
import functools
import math

import jax
import jax.numpy as jnp
import numpy as np
from jax.experimental import pallas as pl
from jax.experimental.pallas import tpu as pltpu


def _largest_divisor(n, cap):
    """Largest divisor of n that is <= cap (>= 1)."""
    d = max(1, min(n, cap))
    while n % d:
        d -= 1
    return d


# -----------------------------------------------------------------------------
# Kernel 1: one (batch, head-group) tile of fused QKV projection + attention.
# Writes heads [grp*G, (grp+1)*G) of batch b as attn^T (d_k, S) tiles into a
# (B, h, d_k, S) bf16 slab.
# -----------------------------------------------------------------------------
def mha_head_group_kernel(q_ref, k_ref, v_ref,
                          wq_ref, wk_ref, wv_ref,
                          bq_ref, bk_ref, bv_ref,
                          out_ref, *, g_heads, d_k, scale):
    bf16, f32 = jnp.bfloat16, jnp.float32
    # Contract the last dim of both operands (trans_b form): no explicit .T.
    dn = (((1,), (1,)), ((), ()))

    q = q_ref[0]                                  # (S, d_model)    bf16
    k = k_ref[0]
    v = v_ref[0]
    wq = wq_ref[0]                                # (G*d_k, d_model) bf16
    wk = wk_ref[0]
    wv = wv_ref[0]

    # Group-wide projections (nn.Linear: y = x @ W^T + b); MXU N dim = G*d_k,
    # f32 accumulation, f32 bias add.
    qh = jax.lax.dot_general(q, wq, dn, preferred_element_type=f32) + bq_ref[0]   # (S, G*d_k)
    kh = jax.lax.dot_general(k, wk, dn, preferred_element_type=f32) + bk_ref[0]   # (S, G*d_k)
    # Value projection produced directly transposed: Vh^T = Wv_grp · v^T.
    vt = jax.lax.dot_general(wv, v, dn, preferred_element_type=f32) + bv_ref[0]   # (G*d_k, S)

    qh = (qh * scale).astype(bf16)
    kh = kh.astype(bf16)
    vt = vt.astype(bf16)

    # Per-head attention inside the group (static Python loop, G is small).
    for g in range(g_heads):
        lo, hi = g * d_k, (g + 1) * d_k
        s = jax.lax.dot_general(qh[:, lo:hi], kh[:, lo:hi], dn,
                                preferred_element_type=f32)                 # (S, S)
        s = s - jnp.max(s, axis=-1, keepdims=True)
        p = jnp.exp(s)                         # f32 exp (portable incl. v5e)
        p = p * pl.reciprocal(jnp.sum(p, axis=-1, keepdims=True), approx=True)
        # attn^T[j, q] = sum_k Vh^T[j, k] * P[q, k]  -> (d_k, S)
        attn_t = jax.lax.dot_general(vt[lo:hi, :], p.astype(bf16), dn,
                                     preferred_element_type=f32)
        out_ref[0, g] = attn_t.astype(out_ref.dtype)


# -----------------------------------------------------------------------------
# Kernel 2: output projection  y = x @ Wo^T + bo, tiled over (rows of B*S,
# output columns of Wo).
# -----------------------------------------------------------------------------
def out_proj_kernel(x_ref, wo_ref, bo_ref, o_ref):
    dn = (((1,), (1,)), ((), ()))                # contract over d_model (trans_b)
    y = jax.lax.dot_general(x_ref[...], wo_ref[...], dn,
                            preferred_element_type=jnp.float32)
    o_ref[...] = y + bo_ref[...]


# -----------------------------------------------------------------------------
# Wrapper
# -----------------------------------------------------------------------------
def multi_head_attention(query, key, value, params, *, h):
    B, S, d_model = query.shape
    assert d_model % h == 0
    d_k = d_model // h
    (wq, bq), (wk, bk), (wv, bv), (wo, bo) = params   # nn.Linear weights: (out, in)
    bf16 = jnp.bfloat16

    # Cast activations/weights to bf16 in the wrapper: halves HBM->VMEM DMA
    # bytes for every block the kernels touch.  Biases stay f32.
    q_b, k_b, v_b = (t.astype(bf16) for t in (query, key, value))

    # Head grouping: G heads per grid step so the projection N dim ~ 256
    # (native MXU width on v6e/v7x; still a 2x fill improvement on v5e).
    G = _largest_divisor(h, max(1, 256 // max(d_k, 1)))
    n_grp = h // G
    gdk = G * d_k

    # Per-group weight/bias views.  nn.Linear weights are (out, in), so group
    # grp owns rows [grp*G*d_k, (grp+1)*G*d_k); no transpose needed because the
    # kernel contracts over the last dims.
    wq_r = wq.reshape(n_grp, gdk, d_model).astype(bf16)
    wk_r = wk.reshape(n_grp, gdk, d_model).astype(bf16)
    wv_r = wv.reshape(n_grp, gdk, d_model).astype(bf16)
    bq_r = bq.reshape(n_grp, 1, gdk)
    bk_r = bk.reshape(n_grp, 1, gdk)
    bv_r = bv.reshape(n_grp, gdk, 1)     # column vector: added to Vh^T (gdk, S)

    x_spec = pl.BlockSpec((1, S, d_model), lambda b, grp: (b, 0, 0))
    w_spec = pl.BlockSpec((1, gdk, d_model), lambda b, grp: (grp, 0, 0))
    bqk_spec = pl.BlockSpec((1, 1, gdk), lambda b, grp: (grp, 0, 0))
    bv_spec = pl.BlockSpec((1, gdk, 1), lambda b, grp: (grp, 0, 0))

    # (B, h, d_k, S) slab of transposed per-head attention outputs, bf16.
    # NOTE: lane-dense stores need S % 128 == 0; at smaller S the store is a
    # masked partial store (correct, just slower at toy shapes).
    slab = pl.pallas_call(
        functools.partial(mha_head_group_kernel, g_heads=G, d_k=d_k,
                          scale=1.0 / math.sqrt(d_k)),
        out_shape=jax.ShapeDtypeStruct((B, h, d_k, S), bf16),
        grid_spec=pltpu.PrefetchScalarGridSpec(
            num_scalar_prefetch=0,
            grid=(B, n_grp),       # groups innermost: q/k/v blocks stay resident per batch
            in_specs=[x_spec, x_spec, x_spec,
                      w_spec, w_spec, w_spec,
                      bqk_spec, bqk_spec, bv_spec],
            out_specs=pl.BlockSpec((1, G, d_k, S), lambda b, grp: (b, grp, 0, 0)),
        ),
        compiler_params=pltpu.CompilerParams(
            dimension_semantics=("parallel", "parallel")),
    )(q_b, k_b, v_b, wq_r, wk_r, wv_r, bq_r, bk_r, bv_r)

    # Exactly PyTorch's _combine_heads: attention (B,h,S,d_k) -> transpose(-2,-1)
    # -> contiguous -> view(B, S, d_model).  `slab` already IS that contiguous
    # (B, h, d_k, S) tensor, so a plain row-major reshape reproduces it (free
    # flatten, no transpose pass).
    BS = B * S
    combined = slab.reshape(BS, d_model)

    # Output projection: row tiles divide B*S exactly (no padded trailing tile)
    # and Wo is tiled along output columns so the weight block stays VMEM-
    # friendly on v7x even at large d_model.
    tm = _largest_divisor(BS, 1024)
    tn = _largest_divisor(d_model, 1024)
    out2d = pl.pallas_call(
        out_proj_kernel,
        out_shape=jax.ShapeDtypeStruct((BS, d_model), jnp.float32),
        grid_spec=pltpu.PrefetchScalarGridSpec(
            num_scalar_prefetch=0,
            grid=(BS // tm, d_model // tn),
            in_specs=[pl.BlockSpec((tm, d_model), lambda m, n: (m, 0)),
                      pl.BlockSpec((tn, d_model), lambda m, n: (n, 0)),
                      pl.BlockSpec((1, tn), lambda m, n: (0, n))],
            out_specs=pl.BlockSpec((tm, tn), lambda m, n: (m, n)),
        ),
        compiler_params=pltpu.CompilerParams(
            dimension_semantics=("parallel", "parallel")),
    )(combined, wo.astype(bf16), bo.reshape(1, d_model))
    return out2d.reshape(B, S, d_model)


# -----------------------------------------------------------------------------
# Pure-JAX f32 reference (mirrors the PyTorch module exactly, mask=None)
# -----------------------------------------------------------------------------
def reference(query, key, value, params, *, h):
    B, S, d_model = query.shape
    d_k = d_model // h
    (wq, bq), (wk, bk), (wv, bv), (wo, bo) = params

    Q = query @ wq.T + bq
    K = key @ wk.T + bk
    V = value @ wv.T + bv

    sep = lambda t: t.reshape(B, S, h, d_k).transpose(0, 2, 1, 3)   # (B,h,S,d_k)
    Qh, Kh, Vh = sep(Q), sep(K), sep(V)

    QK = jnp.einsum("bhqd,bhkd->bhqk", Qh, Kh) / math.sqrt(d_k)
    P = jax.nn.softmax(QK, axis=-1)
    A = jnp.einsum("bhqk,bhkd->bhqd", P, Vh)                        # (B,h,S,d_k)

    combined = jnp.transpose(A, (0, 1, 3, 2)).reshape(B, S, d_model)
    return combined @ wo.T + bo


# -----------------------------------------------------------------------------
def init_linear(key, d_model):
    # PyTorch nn.Linear default init: U(-1/sqrt(fan_in), 1/sqrt(fan_in))
    kw, kb = jax.random.split(key)
    bound = 1.0 / math.sqrt(d_model)
    w = jax.random.uniform(kw, (d_model, d_model), jnp.float32, -bound, bound)
    b = jax.random.uniform(kb, (d_model,), jnp.float32, -bound, bound)
    return w, b


if __name__ == "__main__":
    B, S, d_model, h = 2, 8, 32, 4

    root = jax.random.PRNGKey(0)
    kq, kk, kv, ko, kx1, kx2, kx3 = jax.random.split(root, 7)

    params = (init_linear(kq, d_model),   # query_weights_multiplication
              init_linear(kk, d_model),   # key_weights_multiplication
              init_linear(kv, d_model),   # value_weights_multiplication
              init_linear(ko, d_model))   # output_weights

    query = jax.random.normal(kx1, (B, S, d_model), jnp.float32)
    key = jax.random.normal(kx2, (B, S, d_model), jnp.float32)
    value = jax.random.normal(kx3, (B, S, d_model), jnp.float32)

    out = multi_head_attention(query, key, value, params, h=h)
    out = jax.block_until_ready(out)

    ref = reference(query, key, value, params, h=h)
    # bf16 inputs + bf16 MXU operands + approx reciprocal -> looser tolerance
    # vs the pure-f32 reference.
    np.testing.assert_allclose(np.asarray(out), np.asarray(ref),
                               rtol=5e-2, atol=5e-2)

    print("KERNEL_OK")
</pallas_src>

<mosaic_0001>
module attributes {stable_mosaic.version = 11 : i64} {
  func.func @mha_head_group_kernel(%arg0: i32, %arg1: i32, %arg2: memref<1x8x32xbf16, #tpu.memory_space<vmem>>, %arg3: memref<1x8x32xbf16, #tpu.memory_space<vmem>>, %arg4: memref<1x8x32xbf16, #tpu.memory_space<vmem>>, %arg5: memref<1x32x32xbf16, #tpu.memory_space<vmem>>, %arg6: memref<1x32x32xbf16, #tpu.memory_space<vmem>>, %arg7: memref<1x32x32xbf16, #tpu.memory_space<vmem>>, %arg8: memref<1x1x32xf32, #tpu.memory_space<vmem>>, %arg9: memref<1x1x32xf32, #tpu.memory_space<vmem>>, %arg10: memref<1x32x1xf32, #tpu.memory_space<vmem>>, %arg11: memref<1x4x8x8xbf16, #tpu.memory_space<vmem>>) attributes {dimension_semantics = [#tpu.dimension_semantics<parallel>, #tpu.dimension_semantics<parallel>], iteration_bounds = array<i64: 2, 1>, scalar_prefetch = 0 : i64, scratch_operands = 0 : i64, tpu.core_type = #tpu.core_type<tc>, window_params = [{transform_indices = @transform_0, window_bounds = array<i64: 1, 8, 32>}, {transform_indices = @transform_1, window_bounds = array<i64: 1, 8, 32>}, {transform_indices = @transform_2, window_bounds = array<i64: 1, 8, 32>}, {transform_indices = @transform_3, window_bounds = array<i64: 1, 32, 32>}, {transform_indices = @transform_4, window_bounds = array<i64: 1, 32, 32>}, {transform_indices = @transform_5, window_bounds = array<i64: 1, 32, 32>}, {transform_indices = @transform_6, window_bounds = array<i64: 1, 1, 32>}, {transform_indices = @transform_7, window_bounds = array<i64: 1, 1, 32>}, {transform_indices = @transform_8, window_bounds = array<i64: 1, 32, 1>}, {transform_indices = @transform_9, window_bounds = array<i64: 1, 4, 8, 8>}]} {
    %c0 = arith.constant 0 : index
    %c0_0 = arith.constant 0 : index
    %c0_1 = arith.constant 0 : index
    %0 = vector.load %arg2[%c0, %c0_0, %c0_1] : memref<1x8x32xbf16, #tpu.memory_space<vmem>>, vector<1x8x32xbf16>
    %1 = vector.shape_cast %0 : vector<1x8x32xbf16> to vector<8x32xbf16>
    %c0_2 = arith.constant 0 : index
    %c0_3 = arith.constant 0 : index
    %c0_4 = arith.constant 0 : index
    %2 = vector.load %arg3[%c0_2, %c0_3, %c0_4] : memref<1x8x32xbf16, #tpu.memory_space<vmem>>, vector<1x8x32xbf16>
    %3 = vector.shape_cast %2 : vector<1x8x32xbf16> to vector<8x32xbf16>
    %c0_5 = arith.constant 0 : index
    %c0_6 = arith.constant 0 : index
    %c0_7 = arith.constant 0 : index
    %4 = vector.load %arg4[%c0_5, %c0_6, %c0_7] : memref<1x8x32xbf16, #tpu.memory_space<vmem>>, vector<1x8x32xbf16>
    %5 = vector.shape_cast %4 : vector<1x8x32xbf16> to vector<8x32xbf16>
    %c0_8 = arith.constant 0 : index
    %c0_9 = arith.constant 0 : index
    %c0_10 = arith.constant 0 : index
    %6 = vector.load %arg5[%c0_8, %c0_9, %c0_10] : memref<1x32x32xbf16, #tpu.memory_space<vmem>>, vector<1x32x32xbf16>
    %7 = vector.shape_cast %6 : vector<1x32x32xbf16> to vector<32x32xbf16>
    %c0_11 = arith.constant 0 : index
    %c0_12 = arith.constant 0 : index
    %c0_13 = arith.constant 0 : index
    %8 = vector.load %arg6[%c0_11, %c0_12, %c0_13] : memref<1x32x32xbf16, #tpu.memory_space<vmem>>, vector<1x32x32xbf16>
    %9 = vector.shape_cast %8 : vector<1x32x32xbf16> to vector<32x32xbf16>
    %c0_14 = arith.constant 0 : index
    %c0_15 = arith.constant 0 : index
    %c0_16 = arith.constant 0 : index
    %10 = vector.load %arg7[%c0_14, %c0_15, %c0_16] : memref<1x32x32xbf16, #tpu.memory_space<vmem>>, vector<1x32x32xbf16>
    %11 = vector.shape_cast %10 : vector<1x32x32xbf16> to vector<32x32xbf16>
    %cst = arith.constant dense<0.000000e+00> : vector<8x32xf32>
    %12 = tpu.matmul %1, %7, %cst {dimension_numbers = #tpu.dot_dimension_numbers<[1], [1], [0], [0], [0, 0, 1, 0], [], []>} : vector<8x32xbf16>, vector<32x32xbf16>, vector<8x32xf32> -> vector<8x32xf32>
    %c0_17 = arith.constant 0 : index
    %c0_18 = arith.constant 0 : index
    %c0_19 = arith.constant 0 : index
    %13 = vector.load %arg8[%c0_17, %c0_18, %c0_19] : memref<1x1x32xf32, #tpu.memory_space<vmem>>, vector<1x1x32xf32>
    %14 = vector.shape_cast %13 : vector<1x1x32xf32> to vector<1x32xf32>
    %15 = vector.broadcast %14 : vector<1x32xf32> to vector<8x32xf32>
    %16 = arith.addf %12, %15 : vector<8x32xf32>
    %cst_20 = arith.constant dense<0.000000e+00> : vector<8x32xf32>
    %17 = tpu.matmul %3, %9, %cst_20 {dimension_numbers = #tpu.dot_dimension_numbers<[1], [1], [0], [0], [0, 0, 1, 0], [], []>} : vector<8x32xbf16>, vector<32x32xbf16>, vector<8x32xf32> -> vector<8x32xf32>
    %c0_21 = arith.constant 0 : index
    %c0_22 = arith.constant 0 : index
    %c0_23 = arith.constant 0 : index
    %18 = vector.load %arg9[%c0_21, %c0_22, %c0_23] : memref<1x1x32xf32, #tpu.memory_space<vmem>>, vector<1x1x32xf32>
    %19 = vector.shape_cast %18 : vector<1x1x32xf32> to vector<1x32xf32>
    %20 = vector.broadcast %19 : vector<1x32xf32> to vector<8x32xf32>
    %21 = arith.addf %17, %20 : vector<8x32xf32>
    %cst_24 = arith.constant dense<0.000000e+00> : vector<32x8xf32>
    %22 = tpu.matmul %11, %5, %cst_24 {dimension_numbers = #tpu.dot_dimension_numbers<[1], [1], [0], [0], [0, 0, 1, 0], [], []>} : vector<32x32xbf16>, vector<8x32xbf16>, vector<32x8xf32> -> vector<32x8xf32>
    %c0_25 = arith.constant 0 : index
    %c0_26 = arith.constant 0 : index
    %c0_27 = arith.constant 0 : index
    %23 = vector.load %arg10[%c0_25, %c0_26, %c0_27] : memref<1x32x1xf32, #tpu.memory_space<vmem>>, vector<1x32x1xf32>
    %24 = vector.shape_cast %23 : vector<1x32x1xf32> to vector<32x1xf32>
    %25 = vector.broadcast %24 : vector<32x1xf32> to vector<32x8xf32>
    %26 = arith.addf %22, %25 : vector<32x8xf32>
    %cst_28 = arith.constant 0.353553385 : f32
    %27 = vector.broadcast %cst_28 : f32 to vector<8x32xf32>
    %28 = arith.mulf %16, %27 : vector<8x32xf32>
    %29 = arith.truncf %28 : vector<8x32xf32> to vector<8x32xbf16>
    %30 = arith.truncf %21 : vector<8x32xf32> to vector<8x32xbf16>
    %31 = arith.truncf %26 : vector<32x8xf32> to vector<32x8xbf16>
    %32 = vector.extract_strided_slice %29 {offsets = [0, 0], sizes = [8, 8], strides = [1, 1]} : vector<8x32xbf16> to vector<8x8xbf16>
    %33 = vector.extract_strided_slice %30 {offsets = [0, 0], sizes = [8, 8], strides = [1, 1]} : vector<8x32xbf16> to vector<8x8xbf16>
    %cst_29 = arith.constant dense<0.000000e+00> : vector<8x8xf32>
    %34 = tpu.matmul %32, %33, %cst_29 {dimension_numbers = #tpu.dot_dimension_numbers<[1], [1], [0], [0], [0, 0, 1, 0], [], []>} : vector<8x8xbf16>, vector<8x8xbf16>, vector<8x8xf32> -> vector<8x8xf32>
    %cst_30 = arith.constant dense<0xFF800000> : vector<8xf32>
    %35 = vector.multi_reduction <maximumf>, %34, %cst_30 [1] : vector<8x8xf32> to vector<8xf32>
    %36 = vector.shape_cast %35 : vector<8xf32> to vector<8x1xf32>
    %37 = vector.broadcast %36 : vector<8x1xf32> to vector<8x8xf32>
    %38 = arith.subf %34, %37 : vector<8x8xf32>
    %39 = math.exp %38 : vector<8x8xf32>
    %cst_31 = arith.constant dense<0.000000e+00> : vector<8xf32>
    %40 = vector.multi_reduction <add>, %39, %cst_31 [1] : vector<8x8xf32> to vector<8xf32>
    %41 = vector.shape_cast %40 : vector<8xf32> to vector<8x1xf32>
    %42 = tpu.reciprocal %41 {approx = true} : vector<8x1xf32> -> vector<8x1xf32>
    %43 = vector.broadcast %42 : vector<8x1xf32> to vector<8x8xf32>
    %44 = arith.mulf %39, %43 : vector<8x8xf32>
    %45 = vector.extract_strided_slice %31 {offsets = [0, 0], sizes = [8, 8], strides = [1, 1]} : vector<32x8xbf16> to vector<8x8xbf16>
    %46 = arith.truncf %44 : vector<8x8xf32> to vector<8x8xbf16>
    %cst_32 = arith.constant dense<0.000000e+00> : vector<8x8xf32>
    %47 = tpu.matmul %45, %46, %cst_32 {dimension_numbers = #tpu.dot_dimension_numbers<[1], [1], [0], [0], [0, 0, 1, 0], [], []>} : vector<8x8xbf16>, vector<8x8xbf16>, vector<8x8xf32> -> vector<8x8xf32>
    %48 = arith.truncf %47 : vector<8x8xf32> to vector<8x8xbf16>
    %c0_33 = arith.constant 0 : index
    %c0_34 = arith.constant 0 : index
    %c0_35 = arith.constant 0 : index
    %c0_36 = arith.constant 0 : index
    %49 = vector.load %arg11[%c0_33, %c0_34, %c0_35, %c0_36] : memref<1x4x8x8xbf16, #tpu.memory_space<vmem>>, vector<1x1x8x8xbf16>
    %50 = vector.shape_cast %49 : vector<1x1x8x8xbf16> to vector<8x8xbf16>
    %51 = vector.shape_cast %48 : vector<8x8xbf16> to vector<1x1x8x8xbf16>
    tpu.vector_store %arg11[%c0_33, %c0_34, %c0_35, %c0_36], %51 {strides = array<i32>} : memref<1x4x8x8xbf16, #tpu.memory_space<vmem>>, vector<1x1x8x8xbf16>,
    %52 = vector.extract_strided_slice %29 {offsets = [0, 8], sizes = [8, 8], strides = [1, 1]} : vector<8x32xbf16> to vector<8x8xbf16>
    %53 = vector.extract_strided_slice %30 {offsets = [0, 8], sizes = [8, 8], strides = [1, 1]} : vector<8x32xbf16> to vector<8x8xbf16>
    %cst_37 = arith.constant dense<0.000000e+00> : vector<8x8xf32>
    %54 = tpu.matmul %52, %53, %cst_37 {dimension_numbers = #tpu.dot_dimension_numbers<[1], [1], [0], [0], [0, 0, 1, 0], [], []>} : vector<8x8xbf16>, vector<8x8xbf16>, vector<8x8xf32> -> vector<8x8xf32>
    %cst_38 = arith.constant dense<0xFF800000> : vector<8xf32>
    %55 = vector.multi_reduction <maximumf>, %54, %cst_38 [1] : vector<8x8xf32> to vector<8xf32>
    %56 = vector.shape_cast %55 : vector<8xf32> to vector<8x1xf32>
    %57 = vector.broadcast %56 : vector<8x1xf32> to vector<8x8xf32>
    %58 = arith.subf %54, %57 : vector<8x8xf32>
    %59 = math.exp %58 : vector<8x8xf32>
    %cst_39 = arith.constant dense<0.000000e+00> : vector<8xf32>
    %60 = vector.multi_reduction <add>, %59, %cst_39 [1] : vector<8x8xf32> to vector<8xf32>
    %61 = vector.shape_cast %60 : vector<8xf32> to vector<8x1xf32>
    %62 = tpu.reciprocal %61 {approx = true} : vector<8x1xf32> -> vector<8x1xf32>
    %63 = vector.broadcast %62 : vector<8x1xf32> to vector<8x8xf32>
    %64 = arith.mulf %59, %63 : vector<8x8xf32>
    %65 = vector.extract_strided_slice %31 {offsets = [8, 0], sizes = [8, 8], strides = [1, 1]} : vector<32x8xbf16> to vector<8x8xbf16>
    %66 = arith.truncf %64 : vector<8x8xf32> to vector<8x8xbf16>
    %cst_40 = arith.constant dense<0.000000e+00> : vector<8x8xf32>
    %67 = tpu.matmul %65, %66, %cst_40 {dimension_numbers = #tpu.dot_dimension_numbers<[1], [1], [0], [0], [0, 0, 1, 0], [], []>} : vector<8x8xbf16>, vector<8x8xbf16>, vector<8x8xf32> -> vector<8x8xf32>
    %68 = arith.truncf %67 : vector<8x8xf32> to vector<8x8xbf16>
    %c0_41 = arith.constant 0 : index
    %c1 = arith.constant 1 : index
    %c0_42 = arith.constant 0 : index
    %c0_43 = arith.constant 0 : index
    %69 = vector.load %arg11[%c0_41, %c1, %c0_42, %c0_43] : memref<1x4x8x8xbf16, #tpu.memory_space<vmem>>, vector<1x1x8x8xbf16>
    %70 = vector.shape_cast %69 : vector<1x1x8x8xbf16> to vector<8x8xbf16>
    %71 = vector.shape_cast %68 : vector<8x8xbf16> to vector<1x1x8x8xbf16>
    tpu.vector_store %arg11[%c0_41, %c1, %c0_42, %c0_43], %71 {strides = array<i32>} : memref<1x4x8x8xbf16, #tpu.memory_space<vmem>>, vector<1x1x8x8xbf16>,
    %72 = vector.extract_strided_slice %29 {offsets = [0, 16], sizes = [8, 8], strides = [1, 1]} : vector<8x32xbf16> to vector<8x8xbf16>
    %73 = vector.extract_strided_slice %30 {offsets = [0, 16], sizes = [8, 8], strides = [1, 1]} : vector<8x32xbf16> to vector<8x8xbf16>
    %cst_44 = arith.constant dense<0.000000e+00> : vector<8x8xf32>
    %74 = tpu.matmul %72, %73, %cst_44 {dimension_numbers = #tpu.dot_dimension_numbers<[1], [1], [0], [0], [0, 0, 1, 0], [], []>} : vector<8x8xbf16>, vector<8x8xbf16>, vector<8x8xf32> -> vector<8x8xf32>
    %cst_45 = arith.constant dense<0xFF800000> : vector<8xf32>
    %75 = vector.multi_reduction <maximumf>, %74, %cst_45 [1] : vector<8x8xf32> to vector<8xf32>
    %76 = vector.shape_cast %75 : vector<8xf32> to vector<8x1xf32>
    %77 = vector.broadcast %76 : vector<8x1xf32> to vector<8x8xf32>
    %78 = arith.subf %74, %77 : vector<8x8xf32>
    %79 = math.exp %78 : vector<8x8xf32>
    %cst_46 = arith.constant dense<0.000000e+00> : vector<8xf32>
    %80 = vector.multi_reduction <add>, %79, %cst_46 [1] : vector<8x8xf32> to vector<8xf32>
    %81 = vector.shape_cast %80 : vector<8xf32> to vector<8x1xf32>
    %82 = tpu.reciprocal %81 {approx = true} : vector<8x1xf32> -> vector<8x1xf32>
    %83 = vector.broadcast %82 : vector<8x1xf32> to vector<8x8xf32>
    %84 = arith.mulf %79, %83 : vector<8x8xf32>
    %85 = vector.extract_strided_slice %31 {offsets = [16, 0], sizes = [8, 8], strides = [1, 1]} : vector<32x8xbf16> to vector<8x8xbf16>
    %86 = arith.truncf %84 : vector<8x8xf32> to vector<8x8xbf16>
    %cst_47 = arith.constant dense<0.000000e+00> : vector<8x8xf32>
    %87 = tpu.matmul %85, %86, %cst_47 {dimension_numbers = #tpu.dot_dimension_numbers<[1], [1], [0], [0], [0, 0, 1, 0], [], []>} : vector<8x8xbf16>, vector<8x8xbf16>, vector<8x8xf32> -> vector<8x8xf32>
    %88 = arith.truncf %87 : vector<8x8xf32> to vector<8x8xbf16>
    %c0_48 = arith.constant 0 : index
    %c2 = arith.constant 2 : index
    %c0_49 = arith.constant 0 : index
    %c0_50 = arith.constant 0 : index
    %89 = vector.load %arg11[%c0_48, %c2, %c0_49, %c0_50] : memref<1x4x8x8xbf16, #tpu.memory_space<vmem>>, vector<1x1x8x8xbf16>
    %90 = vector.shape_cast %89 : vector<1x1x8x8xbf16> to vector<8x8xbf16>
    %91 = vector.shape_cast %88 : vector<8x8xbf16> to vector<1x1x8x8xbf16>
    tpu.vector_store %arg11[%c0_48, %c2, %c0_49, %c0_50], %91 {strides = array<i32>} : memref<1x4x8x8xbf16, #tpu.memory_space<vmem>>, vector<1x1x8x8xbf16>,
    %92 = vector.extract_strided_slice %29 {offsets = [0, 24], sizes = [8, 8], strides = [1, 1]} : vector<8x32xbf16> to vector<8x8xbf16>
    %93 = vector.extract_strided_slice %30 {offsets = [0, 24], sizes = [8, 8], strides = [1, 1]} : vector<8x32xbf16> to vector<8x8xbf16>
    %cst_51 = arith.constant dense<0.000000e+00> : vector<8x8xf32>
    %94 = tpu.matmul %92, %93, %cst_51 {dimension_numbers = #tpu.dot_dimension_numbers<[1], [1], [0], [0], [0, 0, 1, 0], [], []>} : vector<8x8xbf16>, vector<8x8xbf16>, vector<8x8xf32> -> vector<8x8xf32>
    %cst_52 = arith.constant dense<0xFF800000> : vector<8xf32>
    %95 = vector.multi_reduction <maximumf>, %94, %cst_52 [1] : vector<8x8xf32> to vector<8xf32>
    %96 = vector.shape_cast %95 : vector<8xf32> to vector<8x1xf32>
    %97 = vector.broadcast %96 : vector<8x1xf32> to vector<8x8xf32>
    %98 = arith.subf %94, %97 : vector<8x8xf32>
    %99 = math.exp %98 : vector<8x8xf32>
    %cst_53 = arith.constant dense<0.000000e+00> : vector<8xf32>
    %100 = vector.multi_reduction <add>, %99, %cst_53 [1] : vector<8x8xf32> to vector<8xf32>
    %101 = vector.shape_cast %100 : vector<8xf32> to vector<8x1xf32>
    %102 = tpu.reciprocal %101 {approx = true} : vector<8x1xf32> -> vector<8x1xf32>
    %103 = vector.broadcast %102 : vector<8x1xf32> to vector<8x8xf32>
    %104 = arith.mulf %99, %103 : vector<8x8xf32>
    %105 = vector.extract_strided_slice %31 {offsets = [24, 0], sizes = [8, 8], strides = [1, 1]} : vector<32x8xbf16> to vector<8x8xbf16>
    %106 = arith.truncf %104 : vector<8x8xf32> to vector<8x8xbf16>
    %cst_54 = arith.constant dense<0.000000e+00> : vector<8x8xf32>
    %107 = tpu.matmul %105, %106, %cst_54 {dimension_numbers = #tpu.dot_dimension_numbers<[1], [1], [0], [0], [0, 0, 1, 0], [], []>} : vector<8x8xbf16>, vector<8x8xbf16>, vector<8x8xf32> -> vector<8x8xf32>
    %108 = arith.truncf %107 : vector<8x8xf32> to vector<8x8xbf16>
    %c0_55 = arith.constant 0 : index
    %c3 = arith.constant 3 : index
    %c0_56 = arith.constant 0 : index
    %c0_57 = arith.constant 0 : index
    %109 = vector.load %arg11[%c0_55, %c3, %c0_56, %c0_57] : memref<1x4x8x8xbf16, #tpu.memory_space<vmem>>, vector<1x1x8x8xbf16>
    %110 = vector.shape_cast %109 : vector<1x1x8x8xbf16> to vector<8x8xbf16>
    %111 = vector.shape_cast %108 : vector<8x8xbf16> to vector<1x1x8x8xbf16>
    tpu.vector_store %arg11[%c0_55, %c3, %c0_56, %c0_57], %111 {strides = array<i32>} : memref<1x4x8x8xbf16, #tpu.memory_space<vmem>>, vector<1x1x8x8xbf16>,
    return
  }
  func.func @transform_0(%arg0: i32, %arg1: i32) -> (i32, i32, i32) {
    %c0_i32 = arith.constant 0 : i32
    %c0_i32_0 = arith.constant 0 : i32
    %c0_i32_1 = arith.constant 0 : i32
    return %arg0, %c0_i32, %c0_i32_0 : i32, i32, i32
  }
  func.func @transform_1(%arg0: i32, %arg1: i32) -> (i32, i32, i32) {
    %c0_i32 = arith.constant 0 : i32
    %c0_i32_0 = arith.constant 0 : i32
    %c0_i32_1 = arith.constant 0 : i32
    return %arg0, %c0_i32, %c0_i32_0 : i32, i32, i32
  }
  func.func @transform_2(%arg0: i32, %arg1: i32) -> (i32, i32, i32) {
    %c0_i32 = arith.constant 0 : i32
    %c0_i32_0 = arith.constant 0 : i32
    %c0_i32_1 = arith.constant 0 : i32
    return %arg0, %c0_i32, %c0_i32_0 : i32, i32, i32
  }
  func.func @transform_3(%arg0: i32, %arg1: i32) -> (i32, i32, i32) {
    %c0_i32 = arith.constant 0 : i32
    %c0_i32_0 = arith.constant 0 : i32
    %c0_i32_1 = arith.constant 0 : i32
    return %arg1, %c0_i32, %c0_i32_0 : i32, i32, i32
  }
  func.func @transform_4(%arg0: i32, %arg1: i32) -> (i32, i32, i32) {
    %c0_i32 = arith.constant 0 : i32
    %c0_i32_0 = arith.constant 0 : i32
    %c0_i32_1 = arith.constant 0 : i32
    return %arg1, %c0_i32, %c0_i32_0 : i32, i32, i32
  }
  func.func @transform_5(%arg0: i32, %arg1: i32) -> (i32, i32, i32) {
    %c0_i32 = arith.constant 0 : i32
    %c0_i32_0 = arith.constant 0 : i32
    %c0_i32_1 = arith.constant 0 : i32
    return %arg1, %c0_i32, %c0_i32_0 : i32, i32, i32
  }
  func.func @transform_6(%arg0: i32, %arg1: i32) -> (i32, i32, i32) {
    %c0_i32 = arith.constant 0 : i32
    %c0_i32_0 = arith.constant 0 : i32
    %c0_i32_1 = arith.constant 0 : i32
    return %arg1, %c0_i32, %c0_i32_0 : i32, i32, i32
  }
  func.func @transform_7(%arg0: i32, %arg1: i32) -> (i32, i32, i32) {
    %c0_i32 = arith.constant 0 : i32
    %c0_i32_0 = arith.constant 0 : i32
    %c0_i32_1 = arith.constant 0 : i32
    return %arg1, %c0_i32, %c0_i32_0 : i32, i32, i32
  }
  func.func @transform_8(%arg0: i32, %arg1: i32) -> (i32, i32, i32) {
    %c0_i32 = arith.constant 0 : i32
    %c0_i32_0 = arith.constant 0 : i32
    %c0_i32_1 = arith.constant 0 : i32
    return %arg1, %c0_i32, %c0_i32_0 : i32, i32, i32
  }
  func.func @transform_9(%arg0: i32, %arg1: i32) -> (i32, i32, i32, i32) {
    %c0_i32 = arith.constant 0 : i32
    %c0_i32_0 = arith.constant 0 : i32
    %c0_i32_1 = arith.constant 0 : i32
    return %arg0, %arg1, %c0_i32, %c0_i32_0 : i32, i32, i32, i32
  }
}

</mosaic_0001>

<llo_original>
// kernel: tpu_custom_call.1
$region0: #{tpu_custom_call.1}
  #allocation0 [shape = 'u32[]', space=smem, size = 0x4, offset = 0x4, fixed_abs, tag = 'smem constant byte address 0x4 - core index']
  #allocation1 [shape = 'u32[144,128]{1,0:T(1,128)}', space=vmem, size = 0x12000, scoped, tag = 'internal scratch']
  %s0 = inlined_call_operand.hbm [shape: bf16[2,8,32], index: 0, kind: input, shape index: {}]
  %s1 = inlined_call_operand.hbm [shape: bf16[2,8,32], index: 1, kind: input, shape index: {}]
  %s2 = inlined_call_operand.hbm [shape: bf16[2,8,32], index: 2, kind: input, shape index: {}]
  %s3 = inlined_call_operand.vmem [shape: bf16[1,32,32], index: 3, kind: input, shape index: {}]
  %s4 = inlined_call_operand.vmem [shape: bf16[1,32,32], index: 4, kind: input, shape index: {}]
  %s5 = inlined_call_operand.hbm [shape: bf16[1,32,32], index: 5, kind: input, shape index: {}]
  %s6 = inlined_call_operand.vmem [shape: f32[1,1,32], index: 6, kind: input, shape index: {}]
  %s7 = inlined_call_operand.vmem [shape: f32[1,1,32], index: 7, kind: input, shape index: {}]
  %s8 = inlined_call_operand.vmem [shape: f32[1,32,1], index: 8, kind: input, shape index: {}]
  %s9 = inlined_call_operand.hbm [shape: bf16[2,4,8,8], index: 9, kind: output, shape index: {}]
  %s10 = sld [smem:[#allocation0]]
  $region85: #{tpu_custom_call.1} parent=0
    _
  %s12 = ssub.s32 1, %s10
  %s13 = scalar_select 0, %s12, %s10
  $region1: #{tpu_custom_call.1} parent=0
    #allocation2 [shape = 'u8[4096]{0}', space=vmem, size = 0x1000, scoped, tag = 'input window, operand 0']
    #allocation3 [shape = 's32[2]{0}', space=sflag, size = 0x8, scoped, tag = 'scoped memory for tpu_custom_call.1']
    #allocation4 [shape = 's32[2]{0}', space=sflag, size = 0x8, scoped, tag = 'scoped memory for tpu_custom_call.1']
    #allocation5 [shape = 'u8[4096]{0}', space=vmem, size = 0x1000, scoped, tag = 'input window, operand 1']
    #allocation6 [shape = 's32[2]{0}', space=sflag, size = 0x8, scoped, tag = 'scoped memory for tpu_custom_call.1']
    #allocation7 [shape = 'u8[4096]{0}', space=vmem, size = 0x1000, scoped, tag = 'input window, operand 2']
    #allocation8 [shape = 'u8[8192]{0}', space=vmem, size = 0x2000, scoped, tag = 'input window, operand 5, single buffered']
    #allocation9 [shape = 's32[1]{0}', space=sflag, size = 0x4, scoped, tag = 'scoped memory for tpu_custom_call.1']
    #allocation10 [shape = 'u8[16384]{0}', space=vmem, size = 0x4000, scoped, tag = 'output window, operand 0']
    %14 = vsyncpa [#allocation3], 0
    %s15 = scalar_lea.sflag [#allocation3], 1
    %16 = vsyncpa %s15, 0
    %17 = vsyncpa [#allocation6], 0
    %s18 = scalar_lea.sflag [#allocation6], 1
    %19 = vsyncpa %s18, 0
    %20 = vsyncpa [#allocation9], 0
    %21 = vsyncpa [#allocation4], 0
    %s22 = scalar_lea.sflag [#allocation4], 1
    %23 = vsyncpa %s22, 0
    loop: start=0, step=1, limit=4
    $region2: #{tpu_custom_call.1} parent=1 // loop_pre_header
      _
    $region3: #{tpu_custom_call.1} parent=1 // loop_header
      %s25 = sphi 0, %s29
      %p26 = scmp.ge.s32.totalorder %s25, 4
      %s32 = sphi 0, %s44
      %s33 = sphi 0, %s40
      %s34 = sphi 0, %s32
      %s35 = sphi 0, %s33
      %s36 = sphi 0, %s34
      %s37 = sphi 0, %s35
      %s47 = sphi 0, %s49
      %s50 = sphi 0, %s47
      %s51 = sphi 0, %s50
      %s67 = sphi 0, %s51
      %s73 = sphi 0, %s75
      %s76 = sphi 0, %s73
      %s77 = sphi 0, %s76
      %s93 = sphi 0, %s77
      %s99 = sphi 0, %s101
      %s102 = sphi 0, %s99
      %s103 = sphi 0, %s102
      %s119 = sphi 0, %s103
      %s125 = sphi 0, %s127
      %s128 = sphi 0, %s125
      %s129 = sphi 0, %s128
      %s145 = sphi 0, %s129
      %s151 = sphi 0, %s153
      %s154 = sphi 0, %s151
      %s155 = sphi 0, %s154
      %s171 = sphi 0, %s155
      %s177 = sphi 0, %s179
      %s180 = sphi 0, %s177
      %s181 = sphi 0, %s180
      %s197 = sphi 0, %s181
      %s203 = sphi 0, %s205
      %s206 = sphi 0, %s203
      %s207 = sphi 0, %s206
      %s223 = sphi 0, %s207
      %s229 = sphi 0, %s231
      %s232 = sphi 0, %s229
      %s233 = sphi 0, %s232
      %s249 = sphi 0, %s233
      %s255 = sphi 0, %s257
      %s258 = sphi 0, %s255
      %s259 = sphi 0, %s258
      %s275 = sphi 0, %s259
      %s283 = sphi 0, %s285
      %s286 = sphi 0, %s283
      %s287 = sphi 0, %s286
      %s303 = sphi 0, %s287
    $region4: #{tpu_custom_call.1} parent=1 // loop_header_branch
      %28 = sbr.rel (%p26) target = $region8
    $region5: #{tpu_custom_call.1} parent=1 // loop_body
      %s30 = ssub.s32 %s25, 1
      %s31 = ssub.s32 %s25, 2
      %s38 = sadd.s32 1, %s33
      %p39 = scmp.ge.s32.totalorder %s38, 1
      %s40 = scalar_select %p39, 0, %s38
      %s41 = sadd.s32 1, %s32
      %s42 = scalar_select %p39, %s41, %s32
      %p43 = scmp.ge.s32.totalorder %s42, 2
      %s44 = scalar_select %p43, 0, %s42
      %s45 = ssub.s32 %s32, %s44
      %p46 = scmp.eq.s32.totalorder %s45, 0
      %s48 = sadd.s32 %s47, 1
      %s49 = scalar_select %p46, %s47, %s48
      %p52 = pneg %p46
      %p53 = scmp.eq.s32.totalorder %s25, 1
      %p54 = por %p52, %p53
      %p55 = scmp.ne.s32.totalorder %s47, %s50
      %p56 = scmp.eq.s32.totalorder %s25, 0
      %p57 = por %p55, %p56
      %p58 = scmp.ne.s32.totalorder %s47, %s50
      %p59 = scmp.eq.s32.totalorder %s30, 1
      %p60 = por %p58, %p59
      %p61 = scmp.ne.s32.totalorder %s50, %s51
      %p62 = scmp.eq.s32.totalorder %s30, 0
      %p63 = por %p61, %p62
      %p64 = scmp.ne.s32.totalorder %s50, %s51
      %p65 = scmp.eq.s32.totalorder %s31, 1
      %p66 = por %p64, %p65
      %p68 = scmp.ne.s32.totalorder %s51, %s67
      %p69 = scmp.eq.s32.totalorder %s31, 0
      %p70 = por %p68, %p69
      %s71 = ssub.s32 %s32, %s44
      %p72 = scmp.eq.s32.totalorder %s71, 0
      %s74 = sadd.s32 %s73, 1
      %s75 = scalar_select %p72, %s73, %s74
      %p78 = pneg %p72
      %p79 = scmp.eq.s32.totalorder %s25, 1
      %p80 = por %p78, %p79
      %p81 = scmp.ne.s32.totalorder %s73, %s76
      %p82 = scmp.eq.s32.totalorder %s25, 0
      %p83 = por %p81, %p82
      %p84 = scmp.ne.s32.totalorder %s73, %s76
      %p85 = scmp.eq.s32.totalorder %s30, 1
      %p86 = por %p84, %p85
      %p87 = scmp.ne.s32.totalorder %s76, %s77
      %p88 = scmp.eq.s32.totalorder %s30, 0
      %p89 = por %p87, %p88
      %p90 = scmp.ne.s32.totalorder %s76, %s77
      %p91 = scmp.eq.s32.totalorder %s31, 1
      %p92 = por %p90, %p91
      %p94 = scmp.ne.s32.totalorder %s77, %s93
      %p95 = scmp.eq.s32.totalorder %s31, 0
      %p96 = por %p94, %p95
      %s97 = ssub.s32 %s32, %s44
      %p98 = scmp.eq.s32.totalorder %s97, 0
      %s100 = sadd.s32 %s99, 1
      %s101 = scalar_select %p98, %s99, %s100
      %p104 = pneg %p98
      %p105 = scmp.eq.s32.totalorder %s25, 1
      %p106 = por %p104, %p105
      %p107 = scmp.ne.s32.totalorder %s99, %s102
      %p108 = scmp.eq.s32.totalorder %s25, 0
      %p109 = por %p107, %p108
      %p110 = scmp.ne.s32.totalorder %s99, %s102
      %p111 = scmp.eq.s32.totalorder %s30, 1
      %p112 = por %p110, %p111
      %p113 = scmp.ne.s32.totalorder %s102, %s103
      %p114 = scmp.eq.s32.totalorder %s30, 0
      %p115 = por %p113, %p114
      %p116 = scmp.ne.s32.totalorder %s102, %s103
      %p117 = scmp.eq.s32.totalorder %s31, 1
      %p118 = por %p116, %p117
      %p120 = scmp.ne.s32.totalorder %s103, %s119
      %p121 = scmp.eq.s32.totalorder %s31, 0
      %p122 = por %p120, %p121
      %s123 = ssub.s32 %s33, %s40
      %p124 = scmp.eq.s32.totalorder %s123, 0
      %s126 = sadd.s32 %s125, 1
      %s127 = scalar_select %p124, %s125, %s126
      %p130 = pneg %p124
      %p131 = scmp.eq.s32.totalorder %s25, 1
      %p132 = por %p130, %p131
      %p133 = scmp.ne.s32.totalorder %s125, %s128
      %p134 = scmp.eq.s32.totalorder %s25, 0
      %p135 = por %p133, %p134
      %p136 = scmp.ne.s32.totalorder %s125, %s128
      %p137 = scmp.eq.s32.totalorder %s30, 1
      %p138 = por %p136, %p137
      %p139 = scmp.ne.s32.totalorder %s128, %s129
      %p140 = scmp.eq.s32.totalorder %s30, 0
      %p141 = por %p139, %p140
      %p142 = scmp.ne.s32.totalorder %s128, %s129
      %p143 = scmp.eq.s32.totalorder %s31, 1
      %p144 = por %p142, %p143
      %p146 = scmp.ne.s32.totalorder %s129, %s145
      %p147 = scmp.eq.s32.totalorder %s31, 0
      %p148 = por %p146, %p147
      %s149 = ssub.s32 %s33, %s40
      %p150 = scmp.eq.s32.totalorder %s149, 0
      %s152 = sadd.s32 %s151, 1
      %s153 = scalar_select %p150, %s151, %s152
      %p156 = pneg %p150
      %p157 = scmp.eq.s32.totalorder %s25, 1
      %p158 = por %p156, %p157
      %p159 = scmp.ne.s32.totalorder %s151, %s154
      %p160 = scmp.eq.s32.totalorder %s25, 0
      %p161 = por %p159, %p160
      %p162 = scmp.ne.s32.totalorder %s151, %s154
      %p163 = scmp.eq.s32.totalorder %s30, 1
      %p164 = por %p162, %p163
      %p165 = scmp.ne.s32.totalorder %s154, %s155
      %p166 = scmp.eq.s32.totalorder %s30, 0
      %p167 = por %p165, %p166
      %p168 = scmp.ne.s32.totalorder %s154, %s155
      %p169 = scmp.eq.s32.totalorder %s31, 1
      %p170 = por %p168, %p169
      %p172 = scmp.ne.s32.totalorder %s155, %s171
      %p173 = scmp.eq.s32.totalorder %s31, 0
      %p174 = por %p172, %p173
      %s175 = ssub.s32 %s33, %s40
      %p176 = scmp.eq.s32.totalorder %s175, 0
      %s178 = sadd.s32 %s177, 1
      %s179 = scalar_select %p176, %s177, %s178
      %p182 = pneg %p176
      %p183 = scmp.eq.s32.totalorder %s25, 1
      %p184 = por %p182, %p183
      %p185 = scmp.ne.s32.totalorder %s177, %s180
      %p186 = scmp.eq.s32.totalorder %s25, 0
      %p187 = por %p185, %p186
      %p188 = scmp.ne.s32.totalorder %s177, %s180
      %p189 = scmp.eq.s32.totalorder %s30, 1
      %p190 = por %p188, %p189
      %p191 = scmp.ne.s32.totalorder %s180, %s181
      %p192 = scmp.eq.s32.totalorder %s30, 0
      %p193 = por %p191, %p192
      %p194 = scmp.ne.s32.totalorder %s180, %s181
      %p195 = scmp.eq.s32.totalorder %s31, 1
      %p196 = por %p194, %p195
      %p198 = scmp.ne.s32.totalorder %s181, %s197
      %p199 = scmp.eq.s32.totalorder %s31, 0
      %p200 = por %p198, %p199
      %s201 = ssub.s32 %s33, %s40
      %p202 = scmp.eq.s32.totalorder %s201, 0
      %s204 = sadd.s32 %s203, 1
      %s205 = scalar_select %p202, %s203, %s204
      %p208 = pneg %p202
      %p209 = scmp.eq.s32.totalorder %s25, 1
      %p210 = por %p208, %p209
      %p211 = scmp.ne.s32.totalorder %s203, %s206
      %p212 = scmp.eq.s32.totalorder %s25, 0
      %p213 = por %p211, %p212
      %p214 = scmp.ne.s32.totalorder %s203, %s206
      %p215 = scmp.eq.s32.totalorder %s30, 1
      %p216 = por %p214, %p215
      %p217 = scmp.ne.s32.totalorder %s206, %s207
      %p218 = scmp.eq.s32.totalorder %s30, 0
      %p219 = por %p217, %p218
      %p220 = scmp.ne.s32.totalorder %s206, %s207
      %p221 = scmp.eq.s32.totalorder %s31, 1
      %p222 = por %p220, %p221
      %p224 = scmp.ne.s32.totalorder %s207, %s223
      %p225 = scmp.eq.s32.totalorder %s31, 0
      %p226 = por %p224, %p225
      %s227 = ssub.s32 %s33, %s40
      %p228 = scmp.eq.s32.totalorder %s227, 0
      %s230 = sadd.s32 %s229, 1
      %s231 = scalar_select %p228, %s229, %s230
      %p234 = pneg %p228
      %p235 = scmp.eq.s32.totalorder %s25, 1
      %p236 = por %p234, %p235
      %p237 = scmp.ne.s32.totalorder %s229, %s232
      %p238 = scmp.eq.s32.totalorder %s25, 0
      %p239 = por %p237, %p238
      %p240 = scmp.ne.s32.totalorder %s229, %s232
      %p241 = scmp.eq.s32.totalorder %s30, 1
      %p242 = por %p240, %p241
      %p243 = scmp.ne.s32.totalorder %s232, %s233
      %p244 = scmp.eq.s32.totalorder %s30, 0
      %p245 = por %p243, %p244
      %p246 = scmp.ne.s32.totalorder %s232, %s233
      %p247 = scmp.eq.s32.totalorder %s31, 1
      %p248 = por %p246, %p247
      %p250 = scmp.ne.s32.totalorder %s233, %s249
      %p251 = scmp.eq.s32.totalorder %s31, 0
      %p252 = por %p250, %p251
      %s253 = ssub.s32 %s33, %s40
      %p254 = scmp.eq.s32.totalorder %s253, 0
      %s256 = sadd.s32 %s255, 1
      %s257 = scalar_select %p254, %s255, %s256
      %p260 = pneg %p254
      %p261 = scmp.eq.s32.totalorder %s25, 1
      %p262 = por %p260, %p261
      %p263 = scmp.ne.s32.totalorder %s255, %s258
      %p264 = scmp.eq.s32.totalorder %s25, 0
      %p265 = por %p263, %p264
      %p266 = scmp.ne.s32.totalorder %s255, %s258
      %p267 = scmp.eq.s32.totalorder %s30, 1
      %p268 = por %p266, %p267
      %p269 = scmp.ne.s32.totalorder %s258, %s259
      %p270 = scmp.eq.s32.totalorder %s30, 0
      %p271 = por %p269, %p270
      %p272 = scmp.ne.s32.totalorder %s258, %s259
      %p273 = scmp.eq.s32.totalorder %s31, 1
      %p274 = por %p272, %p273
      %p276 = scmp.ne.s32.totalorder %s259, %s275
      %p277 = scmp.eq.s32.totalorder %s31, 0
      %p278 = por %p276, %p277
      %s279 = ssub.s32 %s32, %s44
      %s280 = ssub.s32 %s33, %s40
      %s281 = sor.u32 %s279, %s280
      %p282 = scmp.eq.s32.totalorder %s281, 0
      %s284 = sadd.s32 %s283, 1
      %s285 = scalar_select %p282, %s283, %s284
      %p288 = pneg %p282
      %p289 = scmp.eq.s32.totalorder %s25, 1
      %p290 = por %p288, %p289
      %p291 = scmp.ne.s32.totalorder %s283, %s286
      %p292 = scmp.eq.s32.totalorder %s25, 0
      %p293 = por %p291, %p292
      %p294 = scmp.ne.s32.totalorder %s283, %s286
      %p295 = scmp.eq.s32.totalorder %s30, 1
      %p296 = por %p294, %p295
      %p297 = scmp.ne.s32.totalorder %s286, %s287
      %p298 = scmp.eq.s32.totalorder %s30, 0
      %p299 = por %p297, %p298
      %p300 = scmp.ne.s32.totalorder %s286, %s287
      %p301 = scmp.eq.s32.totalorder %s31, 1
      %p302 = por %p300, %p301
      %p304 = scmp.ne.s32.totalorder %s287, %s303
      %p305 = scmp.eq.s32.totalorder %s31, 0
      %p306 = por %p304, %p305
      %p307 = scmp.le.s32.totalorder 1, %s25
      %p308 = scmp.lt.s32.totalorder %s25, 3
      %p309 = pnand %p307, %p308
      %p310 = pneg %p309
      // Predicated region
      $region9: #{tpu_custom_call.1} parent=5 // pred_check
        _
      $region10: #{tpu_custom_call.1} parent=5 // pred_check_branch
        %312 = sbr.rel (%p309) target = $region12
      $region11: #{tpu_custom_call.1} parent=5 // pred_region
        %s313 = ssub.s32 %s25, 1
        // Predicated region
        $region13: #{tpu_custom_call.1} parent=11 // pred_check
          %p314 = pneg %p141
        $region14: #{tpu_custom_call.1} parent=11 // pred_check_branch
          %316 = sbr.rel (%p314) target = $region16
        $region15: #{tpu_custom_call.1} parent=11 // pred_region
          %p317 = scmp.lt.s32.totalorder %s35, 0
          %s318 = scalar_select %p317, %s35, 0
          %s319 = smul.addr %s318, 4
          %s320 = smul.addr %s319, 4
          %s321 = scalar_lea.vmem %s3, %s320
        $region16: #{tpu_custom_call.1} parent=11 // pred_fallthru
          _
        // Predicated region
        $region17: #{tpu_custom_call.1} parent=11 // pred_check
          %p322 = pneg %p167
        $region18: #{tpu_custom_call.1} parent=11 // pred_check_branch
          %324 = sbr.rel (%p322) target = $region20
        $region19: #{tpu_custom_call.1} parent=11 // pred_region
          %p325 = scmp.lt.s32.totalorder %s35, 0
          %s326 = scalar_select %p325, %s35, 0
          %s327 = smul.addr %s326, 4
          %s328 = smul.addr %s327, 4
          %s329 = scalar_lea.vmem %s4, %s328
        $region20: #{tpu_custom_call.1} parent=11 // pred_fallthru
          _
        // Predicated region
        $region21: #{tpu_custom_call.1} parent=11 // pred_check
          %p330 = pneg %p193
        $region22: #{tpu_custom_call.1} parent=11 // pred_check_branch
          %332 = sbr.rel (%p330) target = $region24
        $region23: #{tpu_custom_call.1} parent=11 // pred_region
          %s334 = ssub.s32 256, 256
          %335 = vsyncadd [#allocation9], %s334
          %s336 = smul.addr %s35, 4
          %s337 = smul.addr %s336, 64
          %s338 = scalar_lea.hbm %s5, %s337
          %s339 = sshll.u32 [#allocation8], 4
          %s340 = int_to_ptr.vmem [resolvable:$true] %s339
          %345 = dma.hbm_to_vmem [thread:$0]  %s338, 256, %s340, [#allocation9], 64, 64, 4
        $region24: #{tpu_custom_call.1} parent=11 // pred_fallthru
          _
        // Predicated region
        $region25: #{tpu_custom_call.1} parent=11 // pred_check
          %p346 = pneg %p219
        $region26: #{tpu_custom_call.1} parent=11 // pred_check_branch
          %348 = sbr.rel (%p346) target = $region28
        $region27: #{tpu_custom_call.1} parent=11 // pred_region
          %p349 = scmp.lt.s32.totalorder %s35, 0
          %s350 = scalar_select %p349, %s35, 0
          %s351 = scalar_lea.vmem %s6, %s350
        $region28: #{tpu_custom_call.1} parent=11 // pred_fallthru
          _
        // Predicated region
        $region29: #{tpu_custom_call.1} parent=11 // pred_check
          %p352 = pneg %p245
        $region30: #{tpu_custom_call.1} parent=11 // pred_check_branch
          %354 = sbr.rel (%p352) target = $region32
        $region31: #{tpu_custom_call.1} parent=11 // pred_region
          %p355 = scmp.lt.s32.totalorder %s35, 0
          %s356 = scalar_select %p355, %s35, 0
          %s357 = scalar_lea.vmem %s7, %s356
        $region32: #{tpu_custom_call.1} parent=11 // pred_fallthru
          _
        // Predicated region
        $region33: #{tpu_custom_call.1} parent=11 // pred_check
          %p358 = pneg %p271
        $region34: #{tpu_custom_call.1} parent=11 // pred_check_branch
          %360 = sbr.rel (%p358) target = $region36
        $region35: #{tpu_custom_call.1} parent=11 // pred_region
          %p361 = scmp.lt.s32.totalorder %s35, 0
          %s362 = scalar_select %p361, %s35, 0
          %s363 = smul.addr %s362, 4
          %s364 = smul.addr %s363, 8
          %s365 = scalar_lea.vmem %s8, %s364
        $region36: #{tpu_custom_call.1} parent=11 // pred_fallthru
          _
      $region12: #{tpu_custom_call.1} parent=5 // pred_fallthru
        _
      %p366 = scmp.lt.s32.totalorder %s25, 2
      // Predicated region
      $region37: #{tpu_custom_call.1} parent=5 // pred_check
        %p367 = pneg %p366
      $region38: #{tpu_custom_call.1} parent=5 // pred_check_branch
        %369 = sbr.rel (%p367) target = $region40
      $region39: #{tpu_custom_call.1} parent=5 // pred_region
        // Predicated region
        $region41: #{tpu_custom_call.1} parent=39 // pred_check
          %p370 = pneg %p57
        $region42: #{tpu_custom_call.1} parent=39 // pred_check_branch
          %372 = sbr.rel (%p370) target = $region44
        $region43: #{tpu_custom_call.1} parent=39 // pred_region
          %s373 = sand.u32 %s47, 1
          %s374 = scalar_lea.sflag [#allocation3], %s373
          %s375 = sand.u32 %s47, 1
          %s376 = smul.addr %s375, 4
          %s377 = scalar_lea.vmem [#allocation2], %s376
          %s379 = ssub.s32 64, 64
          %380 = vsyncadd %s374, %s379
          %s381 = smul.addr %s32, 64
          %s382 = scalar_lea.hbm %s0, %s381
          %s384 = sshll.u32 %s377, 4
          %s385 = int_to_ptr.vmem [resolvable:$true] %s384
          %387 = dma.hbm_to_vmem [thread:$0]  %s382, 64, %s385, %s374
        $region44: #{tpu_custom_call.1} parent=39 // pred_fallthru
          _
        // Predicated region
        $region45: #{tpu_custom_call.1} parent=39 // pred_check
          %p388 = pneg %p83
        $region46: #{tpu_custom_call.1} parent=39 // pred_check_branch
          %390 = sbr.rel (%p388) target = $region48
        $region47: #{tpu_custom_call.1} parent=39 // pred_region
          %s391 = sand.u32 %s25, 1
          %s392 = scalar_lea.sflag [#allocation6], %s391
          %s393 = sand.u32 %s73, 1
          %s394 = smul.addr %s393, 4
          %s395 = scalar_lea.vmem [#allocation5], %s394
          %s397 = ssub.s32 64, 64
          %398 = vsyncadd %s392, %s397
          %s399 = smul.addr %s32, 64
          %s400 = scalar_lea.hbm %s1, %s399
          %s402 = sshll.u32 %s395, 4
          %s403 = int_to_ptr.vmem [resolvable:$true] %s402
          %405 = dma.hbm_to_vmem [thread:$0]  %s400, 64, %s403, %s392
        $region48: #{tpu_custom_call.1} parent=39 // pred_fallthru
          _
        // Predicated region
        $region49: #{tpu_custom_call.1} parent=39 // pred_check
          %p406 = pneg %p109
        $region50: #{tpu_custom_call.1} parent=39 // pred_check_branch
          %408 = sbr.rel (%p406) target = $region52
        $region51: #{tpu_custom_call.1} parent=39 // pred_region
          %s409 = sand.u32 %s25, 1
          %s410 = scalar_lea.sflag [#allocation6], %s409
          %s411 = sand.u32 %s99, 1
          %s412 = smul.addr %s411, 4
          %s413 = scalar_lea.vmem [#allocation7], %s412
          %s415 = ssub.s32 64, 64
          %416 = vsyncadd %s410, %s415
          %s417 = smul.addr %s32, 64
          %s418 = scalar_lea.hbm %s2, %s417
          %s420 = sshll.u32 %s413, 4
          %s421 = int_to_ptr.vmem [resolvable:$true] %s420
          %423 = dma.hbm_to_vmem [thread:$0]  %s418, 64, %s421, %s410
        $region52: #{tpu_custom_call.1} parent=39 // pred_fallthru
          _
      $region40: #{tpu_custom_call.1} parent=5 // pred_fallthru
        _
      %p424 = scmp.le.s32.totalorder 1, %s25
      %p425 = scmp.lt.s32.totalorder %s25, 3
      %p426 = pnand %p424, %p425
      %p427 = pneg %p426
      // Predicated region
      $region53: #{tpu_custom_call.1} parent=5 // pred_check
        _
      $region54: #{tpu_custom_call.1} parent=5 // pred_check_branch
        %429 = sbr.rel (%p426) target = $region56
      $region55: #{tpu_custom_call.1} parent=5 // pred_region
        %s430 = ssub.s32 %s25, 1
        %s431 = sand.u32 %s50, 1
        %s432 = scalar_lea.sflag [#allocation3], %s431
        %s433 = sand.u32 %s50, 1
        %s434 = smul.addr %s433, 4
        %s435 = scalar_lea.vmem [#allocation2], %s434
        // Predicated region
        $region57: #{tpu_custom_call.1} parent=55 // pred_check
          %p436 = pneg %p63
        $region58: #{tpu_custom_call.1} parent=55 // pred_check_branch
          %438 = sbr.rel (%p436) target = $region60
        $region59: #{tpu_custom_call.1} parent=55 // pred_region
          %439 = dma.done %s432, 64
        $region60: #{tpu_custom_call.1} parent=55 // pred_fallthru
          _
        %s440 = sand.u32 %s30, 1
        %s441 = scalar_lea.sflag [#allocation6], %s440
        %s442 = sand.u32 %s76, 1
        %s443 = smul.addr %s442, 4
        %s444 = scalar_lea.vmem [#allocation5], %s443
        // Predicated region
        $region61: #{tpu_custom_call.1} parent=55 // pred_check
          %p445 = pneg %p89
        $region62: #{tpu_custom_call.1} parent=55 // pred_check_branch
          %447 = sbr.rel (%p445) target = $region64
        $region63: #{tpu_custom_call.1} parent=55 // pred_region
          %448 = dma.done %s441, 64
        $region64: #{tpu_custom_call.1} parent=55 // pred_fallthru
          _
        %s449 = sand.u32 %s30, 1
        %s450 = scalar_lea.sflag [#allocation6], %s449
        %s451 = sand.u32 %s102, 1
        %s452 = smul.addr %s451, 4
        %s453 = scalar_lea.vmem [#allocation7], %s452
        // Predicated region
        $region65: #{tpu_custom_call.1} parent=55 // pred_check
          %p454 = pneg %p115
        $region66: #{tpu_custom_call.1} parent=55 // pred_check_branch
          %456 = sbr.rel (%p454) target = $region68
        $region67: #{tpu_custom_call.1} parent=55 // pred_region
          %457 = dma.done %s450, 64
        $region68: #{tpu_custom_call.1} parent=55 // pred_fallthru
          _
        // Predicated region
        $region69: #{tpu_custom_call.1} parent=55 // pred_check
          %p458 = pneg %p193
        $region70: #{tpu_custom_call.1} parent=55 // pred_check_branch
          %460 = sbr.rel (%p458) target = $region72
        $region71: #{tpu_custom_call.1} parent=55 // pred_region
          %461 = dma.done [#allocation9], 256
        $region72: #{tpu_custom_call.1} parent=55 // pred_fallthru
          _
        %s462 = sand.u32 %s50, 1
        %s463 = scalar_lea.sflag [#allocation3], %s462
        %s464 = sand.u32 %s50, 1
        %s465 = smul.addr %s464, 4
        %s466 = scalar_lea.vmem [#allocation2], %s465
        %p467 = pneg %p63
        %p468 = pneg %p60
        %s469 = sand.u32 %s30, 1
        %s470 = scalar_lea.sflag [#allocation6], %s469
        %s471 = sand.u32 %s76, 1
        %s472 = smul.addr %s471, 4
        %s473 = scalar_lea.vmem [#allocation5], %s472
        %p474 = pneg %p89
        %p475 = pneg %p86
        %s476 = sand.u32 %s30, 1
        %s477 = scalar_lea.sflag [#allocation6], %s476
        %s478 = sand.u32 %s102, 1
        %s479 = smul.addr %s478, 4
        %s480 = scalar_lea.vmem [#allocation7], %s479
        %p481 = pneg %p115
        %p482 = pneg %p112
        %p483 = scmp.lt.s32.totalorder %s35, 0
        %s484 = scalar_select %p483, %s35, 0
        %s485 = smul.addr %s484, 4
        %s486 = smul.addr %s485, 4
        %s487 = scalar_lea.vmem %s3, %s486
        %p488 = pneg %p141
        %p489 = pneg %p138
        %p490 = scmp.lt.s32.totalorder %s35, 0
        %s491 = scalar_select %p490, %s35, 0
        %s492 = smul.addr %s491, 4
        %s493 = smul.addr %s492, 4
        %s494 = scalar_lea.vmem %s4, %s493
        %p495 = pneg %p167
        %p496 = pneg %p164
        %p497 = pneg %p193
        %p498 = pneg %p190
        %p499 = scmp.lt.s32.totalorder %s35, 0
        %s500 = scalar_select %p499, %s35, 0
        %s501 = scalar_lea.vmem %s6, %s500
        %p502 = pneg %p219
        %p503 = pneg %p216
        %p504 = scmp.lt.s32.totalorder %s35, 0
        %s505 = scalar_select %p504, %s35, 0
        %s506 = scalar_lea.vmem %s7, %s505
        %p507 = pneg %p245
        %p508 = pneg %p242
        %p509 = scmp.lt.s32.totalorder %s35, 0
        %s510 = scalar_select %p509, %s35, 0
        %s511 = smul.addr %s510, 4
        %s512 = smul.addr %s511, 8
        %s513 = scalar_lea.vmem %s8, %s512
        %p514 = pneg %p271
        %p515 = pneg %p268
        %p516 = pneg %p299
        %p517 = pneg %p296
        %s518 = sand.u32 %s286, 1
        %s519 = scalar_lea.sflag [#allocation4], %s518
        %s520 = sand.u32 %s286, 1
        %s521 = smul.addr %s520, 16
        %s522 = scalar_lea.vmem [#allocation10], %s521
        %p523 = scmp.lt.s32.totalorder %s35, 0
        %s524 = scalar_select %p523, %s35, 0
        %s525 = smul.addr %s524, 4
        %s526 = smul.addr %s525, 4
        %s527 = scalar_lea.vmem %s3, %s526
        %p528 = scmp.lt.s32.totalorder %s35, 0
        %s529 = scalar_select %p528, %s35, 0
        %s530 = smul.addr %s529, 4
        %s531 = smul.addr %s530, 4
        %s532 = scalar_lea.vmem %s4, %s531
        %p533 = scmp.lt.s32.totalorder %s35, 0
        %s534 = scalar_select %p533, %s35, 0
        %s535 = scalar_lea.vmem %s6, %s534
        %p536 = scmp.lt.s32.totalorder %s35, 0
        %s537 = scalar_select %p536, %s35, 0
        %s538 = scalar_lea.vmem %s7, %s537
        %p539 = scmp.lt.s32.totalorder %s35, 0
        %s540 = scalar_select %p539, %s35, 0
        %s541 = smul.addr %s540, 4
        %s542 = smul.addr %s541, 8
        %s543 = scalar_lea.vmem %s8, %s542
        %s544 = smul.u32 4, %s35
        %v546 = vld [vmem:[%s435] sm:$0xf]
        %v547 = vld [vmem:[%s444] sm:$0xf]
        %v548 = vld [vmem:[%s453] sm:$0xf]
        %v549 = vld [vmem:[%s527] sm:$0xf]
        %v550 = vld [vmem:[%s527 + $0x4] sm:$0xf]
        %v551 = vld [vmem:[%s527 + $0x8] sm:$0xf]
        %v552 = vld [vmem:[%s527 + $0xc] sm:$0xf]
        %v553 = vld [vmem:[%s532] sm:$0xf]
        %v554 = vld [vmem:[%s532 + $0x4] sm:$0xf]
        %v555 = vld [vmem:[%s532 + $0x8] sm:$0xf]
        %v556 = vld [vmem:[%s532 + $0xc] sm:$0xf]
        %v557 = vld [vmem:[#allocation8] sm:$0xf]
        %v558 = vld [vmem:[#allocation8 + $0x4] sm:$0xf]
        %v559 = vld [vmem:[#allocation8 + $0x8] sm:$0xf]
        %v560 = vld [vmem:[#allocation8 + $0xc] sm:$0xf]
        %v561 = vld [vmem:[%s535] sm:$0x1]
        %v563 = vlaneseq
        %v564 = vshrl.u32 %v563, 7
        %v565 = vsub.s32 0, %v564
        %v566 = vrot.slane %v561, %v565
        %v572 = vunpack.c.l.b16 %v549
        %v573 = vunpack.c.l.b16 %v550
        %v574 = vunpack.c.l.b16 %v551
        %v575 = vunpack.c.l.b16 %v552
        %v576 = vpack.c.b16 %v573, %v572
        %v577 = vpack.c.b16 %v575, %v574
        %vm578 = vcmask 261120
        %v580 = vsel %vm578, %v546, 0
        %v583 = vsel %vm578, %v576, 0
        %v586 = vsel %vm578, %v577, 0
        %588 = vmatprep.subr.bf16.mxu0 0
        %589 = vmatpush1.bf16.xpose.msra.mxu0 0
        %590 = vmatprep.subr.bf16.mxu0 0
        %591 = vmatpush1.bf16.xpose.msra.mxu0 0
        %592 = vmatprep.subr.bf16.mxu0 0
        %593 = vmatpush1.bf16.xpose.msra.mxu0 0
        %594 = vmatprep.subr.bf16.mxu0 0
        %595 = vmatpush1.bf16.xpose.msra.mxu0 0
        %596 = vmatprep.subr.bf16.mxu0 0
        %597 = vmatpush1.bf16.xpose.msra.mxu0 0
        %598 = vmatprep.subr.bf16.mxu0 0
        %599 = vmatpush1.bf16.xpose.msra.mxu0 0
        %600 = vmatprep.subr.bf16.mxu0 0
        %601 = vmatpush1.bf16.xpose.msra.mxu0 %v586
        %602 = vmatprep.subr.bf16.mxu0 0
        %603 = vmatpush1.bf16.xpose.msra.mxu0 %v583
        %604 = vmatprep.subr.bf16.mxu0 0
        %605 = vmatpush2.bf16.xpose.msra.mxu0 0
        %606 = vmatprep.subr.bf16.mxu0 0
        %607 = vmatpush2.bf16.xpose.msra.mxu0 0
        %608 = vmatprep.subr.bf16.mxu0 0
        %609 = vmatpush2.bf16.xpose.msra.mxu0 0
        %610 = vmatprep.subr.bf16.mxu0 0
        %611 = vmatpush2.bf16.xpose.msra.mxu0 0
        %612 = vmatprep.subr.bf16.mxu0 0
        %613 = vmatpush2.bf16.xpose.msra.mxu0 0
        %614 = vmatprep.subr.bf16.mxu0 0
        %615 = vmatpush2.bf16.xpose.msra.mxu0 0
        %616 = vmatprep.subr.bf16.mxu0 0
        %617 = vmatpush2.bf16.xpose.msra.mxu0 0
        %618 = vmatprep.subr.bf16.mxu0 0
        %619 = vmatpush2.bf16.xpose.msra.mxu0 0
        %620 = vmatprep.mubr.bf16.mxu0 0
        %621 = vmatmul.mubr.bf16.gmra.mxu0 %v580
        %v622 = vpop.f32.mrf.mxu0
        %v623 = vadd.f32 %v566, %v622
        %v624 = vpop.f32.mrf.mxu0
        %v625 = vpop.f32.mrf.mxu0
        %v626 = vpop.f32.mrf.mxu0
        %627 = vdwg.mxu0
        %v628 = vld [vmem:[%s538] sm:$0x1]
        %v630 = vlaneseq
        %v631 = vshrl.u32 %v630, 7
        %v632 = vsub.s32 0, %v631
        %v633 = vrot.slane %v628, %v632
        %v639 = vunpack.c.l.b16 %v553
        %v640 = vunpack.c.l.b16 %v554
        %v641 = vunpack.c.l.b16 %v555
        %v642 = vunpack.c.l.b16 %v556
        %v643 = vpack.c.b16 %v640, %v639
        %v644 = vpack.c.b16 %v642, %v641
        %v646 = vsel %vm578, %v547, 0
        %v649 = vsel %vm578, %v643, 0
        %v652 = vsel %vm578, %v644, 0
        %654 = vmatprep.subr.bf16.mxu0 0
        %655 = vmatpush1.bf16.xpose.msra.mxu0 0
        %656 = vmatprep.subr.bf16.mxu0 0
        %657 = vmatpush1.bf16.xpose.msra.mxu0 0
        %658 = vmatprep.subr.bf16.mxu0 0
        %659 = vmatpush1.bf16.xpose.msra.mxu0 0
        %660 = vmatprep.subr.bf16.mxu0 0
        %661 = vmatpush1.bf16.xpose.msra.mxu0 0
        %662 = vmatprep.subr.bf16.mxu0 0
        %663 = vmatpush1.bf16.xpose.msra.mxu0 0
        %664 = vmatprep.subr.bf16.mxu0 0
        %665 = vmatpush1.bf16.xpose.msra.mxu0 0
        %666 = vmatprep.subr.bf16.mxu0 0
        %667 = vmatpush1.bf16.xpose.msra.mxu0 %v652
        %668 = vmatprep.subr.bf16.mxu0 0
        %669 = vmatpush1.bf16.xpose.msra.mxu0 %v649
        %670 = vmatprep.subr.bf16.mxu0 0
        %671 = vmatpush2.bf16.xpose.msra.mxu0 0
        %672 = vmatprep.subr.bf16.mxu0 0
        %673 = vmatpush2.bf16.xpose.msra.mxu0 0
        %674 = vmatprep.subr.bf16.mxu0 0
        %675 = vmatpush2.bf16.xpose.msra.mxu0 0
        %676 = vmatprep.subr.bf16.mxu0 0
        %677 = vmatpush2.bf16.xpose.msra.mxu0 0
        %678 = vmatprep.subr.bf16.mxu0 0
        %679 = vmatpush2.bf16.xpose.msra.mxu0 0
        %680 = vmatprep.subr.bf16.mxu0 0
        %681 = vmatpush2.bf16.xpose.msra.mxu0 0
        %682 = vmatprep.subr.bf16.mxu0 0
        %683 = vmatpush2.bf16.xpose.msra.mxu0 0
        %684 = vmatprep.subr.bf16.mxu0 0
        %685 = vmatpush2.bf16.xpose.msra.mxu0 0
        %686 = vmatprep.mubr.bf16.mxu0 0
        %687 = vmatmul.mubr.bf16.gmra.mxu0 %v646
        %v688 = vpop.f32.mrf.mxu0
        %v689 = vadd.f32 %v633, %v688
        %v690 = vpop.f32.mrf.mxu0
        %v691 = vpop.f32.mrf.mxu0
        %v692 = vpop.f32.mrf.mxu0
        %693 = vdwg.mxu0
        %v694 = vld [vmem:[%s543] sm:$0xff]
        %v695 = vld [vmem:[%s543 + $0x8] sm:$0xff]
        %v696 = vld [vmem:[%s543 + $0x10] sm:$0xff]
        %v697 = vld [vmem:[%s543 + $0x18] sm:$0xff]
        %699 = vset.pattern.permute.xlu0 0
        %700 = vperm.xlu0 %699, %v694
        %v701 = vpop.permute.xlu0 %700
        %704 = vset.pattern.permute.xlu0 0
        %705 = vperm.xlu0 %704, %v695
        %v706 = vpop.permute.xlu0 %705
        %709 = vset.pattern.permute.xlu0 0
        %710 = vperm.xlu0 %709, %v696
        %v711 = vpop.permute.xlu0 %710
        %714 = vset.pattern.permute.xlu0 0
        %715 = vperm.xlu0 %714, %v697
        %v716 = vpop.permute.xlu0 %715
        %v722 = vunpack.c.l.b16 %v557
        %v723 = vunpack.c.l.b16 %v558
        %v724 = vunpack.c.l.b16 %v559
        %v725 = vunpack.c.l.b16 %v560
        %v726 = vpack.c.b16 %v723, %v722
        %v727 = vpack.c.b16 %v725, %v724
        %v729 = vsel %vm578, %v726, 0
        %v732 = vsel %vm578, %v727, 0
        %v735 = vsel %vm578, %v548, 0
        %737 = vmatprep.subr.bf16.mxu0 0
        %738 = vmatpush1.bf16.xpose.msra.mxu0 0
        %739 = vmatprep.subr.bf16.mxu0 0
        %740 = vmatpush1.bf16.xpose.msra.mxu0 0
        %741 = vmatprep.subr.bf16.mxu0 0
        %742 = vmatpush1.bf16.xpose.msra.mxu0 0
        %743 = vmatprep.subr.bf16.mxu0 0
        %744 = vmatpush1.bf16.xpose.msra.mxu0 0
        %745 = vmatprep.subr.bf16.mxu0 0
        %746 = vmatpush1.bf16.xpose.msra.mxu0 0
        %747 = vmatprep.subr.bf16.mxu0 0
        %748 = vmatpush1.bf16.xpose.msra.mxu0 0
        %749 = vmatprep.subr.bf16.mxu0 0
        %750 = vmatpush1.bf16.xpose.msra.mxu0 0
        %751 = vmatprep.subr.bf16.mxu0 0
        %752 = vmatpush1.bf16.xpose.msra.mxu0 %v735
        %753 = vmatprep.subr.bf16.mxu0 0
        %754 = vmatpush2.bf16.xpose.msra.mxu0 0
        %755 = vmatprep.subr.bf16.mxu0 0
        %756 = vmatpush2.bf16.xpose.msra.mxu0 0
        %757 = vmatprep.subr.bf16.mxu0 0
        %758 = vmatpush2.bf16.xpose.msra.mxu0 0
        %759 = vmatprep.subr.bf16.mxu0 0
        %760 = vmatpush2.bf16.xpose.msra.mxu0 0
        %761 = vmatprep.subr.bf16.mxu0 0
        %762 = vmatpush2.bf16.xpose.msra.mxu0 0
        %763 = vmatprep.subr.bf16.mxu0 0
        %764 = vmatpush2.bf16.xpose.msra.mxu0 0
        %765 = vmatprep.subr.bf16.mxu0 0
        %766 = vmatpush2.bf16.xpose.msra.mxu0 0
        %767 = vmatprep.subr.bf16.mxu0 0
        %768 = vmatpush2.bf16.xpose.msra.mxu0 0
        %769 = vmatprep.mubr.bf16.mxu0 0
        %770 = vmatmul.mubr.bf16.gmra.mxu0 %v729
        %v771 = vpop.f32.mrf.mxu0
        %v772 = vadd.f32 %v701, %v771
        %v773 = vpop.f32.mrf.mxu0
        %v774 = vpop.f32.mrf.mxu0
        %v775 = vadd.f32 %v706, %v774
        %v776 = vpop.f32.mrf.mxu0
        %777 = vmatprep.mubr.bf16.mxu0 0
        %778 = vmatmul.mubr.bf16.gmra.mxu0 %v732
        %v779 = vpop.f32.mrf.mxu0
        %v780 = vadd.f32 %v711, %v779
        %v781 = vpop.f32.mrf.mxu0
        %v782 = vpop.f32.mrf.mxu0
        %v783 = vadd.f32 %v716, %v782
        %v784 = vpop.f32.mrf.mxu0
        %785 = vdwg.mxu0
        %v786 = vmul.f32 %v623, 0.35355338
        %v787 = vpack.c.bf16 %v786, %v786
        %v788 = vpack.c.bf16 %v689, %v689
        %v789 = vpack.c.bf16 %v775, %v772
        %v790 = vpack.c.bf16 %v783, %v780
        %vm791 = vcmask 64512
        %v793 = vsel %vm791, %v787, 0
        %v796 = vsel %vm791, %v788, 0
        %798 = vmatprep.subr.bf16.mxu0 0
        %799 = vmatpush1.bf16.xpose.msra.mxu0 0
        %800 = vmatprep.subr.bf16.mxu0 0
        %801 = vmatpush1.bf16.xpose.msra.mxu0 0
        %802 = vmatprep.subr.bf16.mxu0 0
        %803 = vmatpush1.bf16.xpose.msra.mxu0 0
        %804 = vmatprep.subr.bf16.mxu0 0
        %805 = vmatpush1.bf16.xpose.msra.mxu0 0
        %806 = vmatprep.subr.bf16.mxu0 0
        %807 = vmatpush1.bf16.xpose.msra.mxu0 0
        %808 = vmatprep.subr.bf16.mxu0 0
        %809 = vmatpush1.bf16.xpose.msra.mxu0 0
        %810 = vmatprep.subr.bf16.mxu0 0
        %811 = vmatpush1.bf16.xpose.msra.mxu0 0
        %812 = vmatprep.subr.bf16.mxu0 0
        %813 = vmatpush1.bf16.xpose.msra.mxu0 %v796
        %814 = vmatprep.subr.bf16.mxu0 0
        %815 = vmatpush2.bf16.xpose.msra.mxu0 0
        %816 = vmatprep.subr.bf16.mxu0 0
        %817 = vmatpush2.bf16.xpose.msra.mxu0 0
        %818 = vmatprep.subr.bf16.mxu0 0
        %819 = vmatpush2.bf16.xpose.msra.mxu0 0
        %820 = vmatprep.subr.bf16.mxu0 0
        %821 = vmatpush2.bf16.xpose.msra.mxu0 0
        %822 = vmatprep.subr.bf16.mxu0 0
        %823 = vmatpush2.bf16.xpose.msra.mxu0 0
        %824 = vmatprep.subr.bf16.mxu0 0
        %825 = vmatpush2.bf16.xpose.msra.mxu0 0
        %826 = vmatprep.subr.bf16.mxu0 0
        %827 = vmatpush2.bf16.xpose.msra.mxu0 0
        %828 = vmatprep.subr.bf16.mxu0 0
        %829 = vmatpush2.bf16.xpose.msra.mxu0 0
        %830 = vmatprep.mubr.bf16.mxu0 0
        %831 = vmatmul.mubr.bf16.gmra.mxu0 %v793
        %v832 = vpop.f32.mrf.mxu0
        %v833 = vadd.f32 0.0, %v832
        %v834 = vpop.f32.mrf.mxu0
        %v835 = vpop.f32.mrf.mxu0
        %v836 = vpop.f32.mrf.mxu0
        %837 = vdwg.mxu0
        %v838 = vsel %vm791, %v833, -inf
        %839 = vmax.xlane.f32.xlu0 %v838
        %v840 = vpop.xlane.xlu0 %839
        %v841 = vsub.f32 %v833, %v840
        %v842 = vmul.f32 %v841, 1.442695
        %v843 = vpow.pop %v842
        %v844 = vsel %vm791, %v843, 0.0
        %845 = vadd.xlane.f32.xlu0 %v844
        %v846 = vpop.xlane.xlu0 %845
        %v847 = vrcp.pop %v846
        %v848 = vmul.f32 %v843, %v847
        %v849 = vpack.c.bf16 %v848, %v848
        %v851 = vsel %vm791, %v789, 0
        %v854 = vsel %vm791, %v849, 0
        %856 = vmatprep.subr.bf16.mxu0 0
        %857 = vmatpush1.bf16.xpose.msra.mxu0 0
        %858 = vmatprep.subr.bf16.mxu0 0
        %859 = vmatpush1.bf16.xpose.msra.mxu0 0
        %860 = vmatprep.subr.bf16.mxu0 0
        %861 = vmatpush1.bf16.xpose.msra.mxu0 0
        %862 = vmatprep.subr.bf16.mxu0 0
        %863 = vmatpush1.bf16.xpose.msra.mxu0 0
        %864 = vmatprep.subr.bf16.mxu0 0
        %865 = vmatpush1.bf16.xpose.msra.mxu0 0
        %866 = vmatprep.subr.bf16.mxu0 0
        %867 = vmatpush1.bf16.xpose.msra.mxu0 0
        %868 = vmatprep.subr.bf16.mxu0 0
        %869 = vmatpush1.bf16.xpose.msra.mxu0 0
        %870 = vmatprep.subr.bf16.mxu0 0
        %871 = vmatpush1.bf16.xpose.msra.mxu0 %v854
        %872 = vmatprep.subr.bf16.mxu0 0
        %873 = vmatpush2.bf16.xpose.msra.mxu0 0
        %874 = vmatprep.subr.bf16.mxu0 0
        %875 = vmatpush2.bf16.xpose.msra.mxu0 0
        %876 = vmatprep.subr.bf16.mxu0 0
        %877 = vmatpush2.bf16.xpose.msra.mxu0 0
        %878 = vmatprep.subr.bf16.mxu0 0
        %879 = vmatpush2.bf16.xpose.msra.mxu0 0
        %880 = vmatprep.subr.bf16.mxu0 0
        %881 = vmatpush2.bf16.xpose.msra.mxu0 0
        %882 = vmatprep.subr.bf16.mxu0 0
        %883 = vmatpush2.bf16.xpose.msra.mxu0 0
        %884 = vmatprep.subr.bf16.mxu0 0
        %885 = vmatpush2.bf16.xpose.msra.mxu0 0
        %886 = vmatprep.subr.bf16.mxu0 0
        %887 = vmatpush2.bf16.xpose.msra.mxu0 0
        %888 = vmatprep.mubr.bf16.mxu0 0
        %889 = vmatmul.mubr.bf16.gmra.mxu0 %v851
        %v890 = vpop.f32.mrf.mxu0
        %v891 = vadd.f32 0.0, %v890
        %v892 = vpop.f32.mrf.mxu0
        %v893 = vpop.f32.mrf.mxu0
        %v894 = vpop.f32.mrf.mxu0
        %895 = vdwg.mxu0
        %v896 = vpack.c.bf16 %v891, %v891
        %vm897 = vcmask 60416
        %898 = vst.msk [vmem:[%s522] sm:$0xf] %vm897, %v896
        %900 = vrot.lane.b32.xlu0 %v787, 120
        %v901 = vpop.permute.xlu0 %900
        %903 = vrot.lane.b32.xlu0 %v788, 120
        %v904 = vpop.permute.xlu0 %903
        %v906 = vsel %vm791, %v901, 0
        %v909 = vsel %vm791, %v904, 0
        %911 = vmatprep.subr.bf16.mxu0 0
        %912 = vmatpush1.bf16.xpose.msra.mxu0 0
        %913 = vmatprep.subr.bf16.mxu0 0
        %914 = vmatpush1.bf16.xpose.msra.mxu0 0
        %915 = vmatprep.subr.bf16.mxu0 0
        %916 = vmatpush1.bf16.xpose.msra.mxu0 0
        %917 = vmatprep.subr.bf16.mxu0 0
        %918 = vmatpush1.bf16.xpose.msra.mxu0 0
        %919 = vmatprep.subr.bf16.mxu0 0
        %920 = vmatpush1.bf16.xpose.msra.mxu0 0
        %921 = vmatprep.subr.bf16.mxu0 0
        %922 = vmatpush1.bf16.xpose.msra.mxu0 0
        %923 = vmatprep.subr.bf16.mxu0 0
        %924 = vmatpush1.bf16.xpose.msra.mxu0 0
        %925 = vmatprep.subr.bf16.mxu0 0
        %926 = vmatpush1.bf16.xpose.msra.mxu0 %v909
        %927 = vmatprep.subr.bf16.mxu0 0
        %928 = vmatpush2.bf16.xpose.msra.mxu0 0
        %929 = vmatprep.subr.bf16.mxu0 0
        %930 = vmatpush2.bf16.xpose.msra.mxu0 0
        %931 = vmatprep.subr.bf16.mxu0 0
        %932 = vmatpush2.bf16.xpose.msra.mxu0 0
        %933 = vmatprep.subr.bf16.mxu0 0
        %934 = vmatpush2.bf16.xpose.msra.mxu0 0
        %935 = vmatprep.subr.bf16.mxu0 0
        %936 = vmatpush2.bf16.xpose.msra.mxu0 0
        %937 = vmatprep.subr.bf16.mxu0 0
        %938 = vmatpush2.bf16.xpose.msra.mxu0 0
        %939 = vmatprep.subr.bf16.mxu0 0
        %940 = vmatpush2.bf16.xpose.msra.mxu0 0
        %941 = vmatprep.subr.bf16.mxu0 0
        %942 = vmatpush2.bf16.xpose.msra.mxu0 0
        %943 = vmatprep.mubr.bf16.mxu0 0
        %944 = vmatmul.mubr.bf16.gmra.mxu0 %v906
        %v945 = vpop.f32.mrf.mxu0
        %v946 = vadd.f32 0.0, %v945
        %v947 = vpop.f32.mrf.mxu0
        %v948 = vpop.f32.mrf.mxu0
        %v949 = vpop.f32.mrf.mxu0
        %950 = vdwg.mxu0
        %v951 = vsel %vm791, %v946, -inf
        %952 = vmax.xlane.f32.xlu0 %v951
        %v953 = vpop.xlane.xlu0 %952
        %v954 = vsub.f32 %v946, %v953
        %v955 = vmul.f32 %v954, 1.442695
        %v956 = vpow.pop %v955
        %v957 = vsel %vm791, %v956, 0.0
        %958 = vadd.xlane.f32.xlu0 %v957
        %v959 = vpop.xlane.xlu0 %958
        %v960 = vrcp.pop %v959
        %v961 = vmul.f32 %v956, %v960
        %v962 = vpack.c.bf16 %v961, %v961
        %v964 = vrot.slane %v789, 4
        %v966 = vsel %vm791, %v964, 0
        %v969 = vsel %vm791, %v962, 0
        %971 = vmatprep.subr.bf16.mxu0 0
        %972 = vmatpush1.bf16.xpose.msra.mxu0 0
        %973 = vmatprep.subr.bf16.mxu0 0
        %974 = vmatpush1.bf16.xpose.msra.mxu0 0
        %975 = vmatprep.subr.bf16.mxu0 0
        %976 = vmatpush1.bf16.xpose.msra.mxu0 0
        %977 = vmatprep.subr.bf16.mxu0 0
        %978 = vmatpush1.bf16.xpose.msra.mxu0 0
        %979 = vmatprep.subr.bf16.mxu0 0
        %980 = vmatpush1.bf16.xpose.msra.mxu0 0
        %981 = vmatprep.subr.bf16.mxu0 0
        %982 = vmatpush1.bf16.xpose.msra.mxu0 0
        %983 = vmatprep.subr.bf16.mxu0 0
        %984 = vmatpush1.bf16.xpose.msra.mxu0 0
        %985 = vmatprep.subr.bf16.mxu0 0
        %986 = vmatpush1.bf16.xpose.msra.mxu0 %v969
        %987 = vmatprep.subr.bf16.mxu0 0
        %988 = vmatpush2.bf16.xpose.msra.mxu0 0
        %989 = vmatprep.subr.bf16.mxu0 0
        %990 = vmatpush2.bf16.xpose.msra.mxu0 0
        %991 = vmatprep.subr.bf16.mxu0 0
        %992 = vmatpush2.bf16.xpose.msra.mxu0 0
        %993 = vmatprep.subr.bf16.mxu0 0
        %994 = vmatpush2.bf16.xpose.msra.mxu0 0
        %995 = vmatprep.subr.bf16.mxu0 0
        %996 = vmatpush2.bf16.xpose.msra.mxu0 0
        %997 = vmatprep.subr.bf16.mxu0 0
        %998 = vmatpush2.bf16.xpose.msra.mxu0 0
        %999 = vmatprep.subr.bf16.mxu0 0
        %1000 = vmatpush2.bf16.xpose.msra.mxu0 0
        %1001 = vmatprep.subr.bf16.mxu0 0
        %1002 = vmatpush2.bf16.xpose.msra.mxu0 0
        %1003 = vmatprep.mubr.bf16.mxu0 0
        %1004 = vmatmul.mubr.bf16.gmra.mxu0 %v966
        %v1005 = vpop.f32.mrf.mxu0
        %v1006 = vadd.f32 0.0, %v1005
        %v1007 = vpop.f32.mrf.mxu0
        %v1008 = vpop.f32.mrf.mxu0
        %v1009 = vpop.f32.mrf.mxu0
        %1010 = vdwg.mxu0
        %v1011 = vpack.c.bf16 %v1006, %v1006
        %s1012 = scalar_lea.vmem %s522, 4 [#allocation10]
        %1013 = vst.msk [vmem:[%s1012] sm:$0xf] %vm897, %v1011
        %1014 = vrot.lane.b32.xlu0 %v787, 112
        %v1015 = vpop.permute.xlu0 %1014
        %1016 = vrot.lane.b32.xlu0 %v788, 112
        %v1017 = vpop.permute.xlu0 %1016
        %v1019 = vsel %vm791, %v1015, 0
        %v1022 = vsel %vm791, %v1017, 0
        %1024 = vmatprep.subr.bf16.mxu0 0
        %1025 = vmatpush1.bf16.xpose.msra.mxu0 0
        %1026 = vmatprep.subr.bf16.mxu0 0
        %1027 = vmatpush1.bf16.xpose.msra.mxu0 0
        %1028 = vmatprep.subr.bf16.mxu0 0
        %1029 = vmatpush1.bf16.xpose.msra.mxu0 0
        %1030 = vmatprep.subr.bf16.mxu0 0
        %1031 = vmatpush1.bf16.xpose.msra.mxu0 0
        %1032 = vmatprep.subr.bf16.mxu0 0
        %1033 = vmatpush1.bf16.xpose.msra.mxu0 0
        %1034 = vmatprep.subr.bf16.mxu0 0
        %1035 = vmatpush1.bf16.xpose.msra.mxu0 0
        %1036 = vmatprep.subr.bf16.mxu0 0
        %1037 = vmatpush1.bf16.xpose.msra.mxu0 0
        %1038 = vmatprep.subr.bf16.mxu0 0
        %1039 = vmatpush1.bf16.xpose.msra.mxu0 %v1022
        %1040 = vmatprep.subr.bf16.mxu0 0
        %1041 = vmatpush2.bf16.xpose.msra.mxu0 0
        %1042 = vmatprep.subr.bf16.mxu0 0
        %1043 = vmatpush2.bf16.xpose.msra.mxu0 0
        %1044 = vmatprep.subr.bf16.mxu0 0
        %1045 = vmatpush2.bf16.xpose.msra.mxu0 0
        %1046 = vmatprep.subr.bf16.mxu0 0
        %1047 = vmatpush2.bf16.xpose.msra.mxu0 0
        %1048 = vmatprep.subr.bf16.mxu0 0
        %1049 = vmatpush2.bf16.xpose.msra.mxu0 0
        %1050 = vmatprep.subr.bf16.mxu0 0
        %1051 = vmatpush2.bf16.xpose.msra.mxu0 0
        %1052 = vmatprep.subr.bf16.mxu0 0
        %1053 = vmatpush2.bf16.xpose.msra.mxu0 0
        %1054 = vmatprep.subr.bf16.mxu0 0
        %1055 = vmatpush2.bf16.xpose.msra.mxu0 0
        %1056 = vmatprep.mubr.bf16.mxu0 0
        %1057 = vmatmul.mubr.bf16.gmra.mxu0 %v1019
        %v1058 = vpop.f32.mrf.mxu0
        %v1059 = vadd.f32 0.0, %v1058
        %v1060 = vpop.f32.mrf.mxu0
        %v1061 = vpop.f32.mrf.mxu0
        %v1062 = vpop.f32.mrf.mxu0
        %1063 = vdwg.mxu0
        %v1064 = vsel %vm791, %v1059, -inf
        %1065 = vmax.xlane.f32.xlu0 %v1064
        %v1066 = vpop.xlane.xlu0 %1065
        %v1067 = vsub.f32 %v1059, %v1066
        %v1068 = vmul.f32 %v1067, 1.442695
        %v1069 = vpow.pop %v1068
        %v1070 = vsel %vm791, %v1069, 0.0
        %1071 = vadd.xlane.f32.xlu0 %v1070
        %v1072 = vpop.xlane.xlu0 %1071
        %v1073 = vrcp.pop %v1072
        %v1074 = vmul.f32 %v1069, %v1073
        %v1075 = vpack.c.bf16 %v1074, %v1074
        %v1077 = vsel %vm791, %v790, 0
        %v1080 = vsel %vm791, %v1075, 0
        %1082 = vmatprep.subr.bf16.mxu0 0
        %1083 = vmatpush1.bf16.xpose.msra.mxu0 0
        %1084 = vmatprep.subr.bf16.mxu0 0
        %1085 = vmatpush1.bf16.xpose.msra.mxu0 0
        %1086 = vmatprep.subr.bf16.mxu0 0
        %1087 = vmatpush1.bf16.xpose.msra.mxu0 0
        %1088 = vmatprep.subr.bf16.mxu0 0
        %1089 = vmatpush1.bf16.xpose.msra.mxu0 0
        %1090 = vmatprep.subr.bf16.mxu0 0
        %1091 = vmatpush1.bf16.xpose.msra.mxu0 0
        %1092 = vmatprep.subr.bf16.mxu0 0
        %1093 = vmatpush1.bf16.xpose.msra.mxu0 0
        %1094 = vmatprep.subr.bf16.mxu0 0
        %1095 = vmatpush1.bf16.xpose.msra.mxu0 0
        %1096 = vmatprep.subr.bf16.mxu0 0
        %1097 = vmatpush1.bf16.xpose.msra.mxu0 %v1080
        %1098 = vmatprep.subr.bf16.mxu0 0
        %1099 = vmatpush2.bf16.xpose.msra.mxu0 0
        %1100 = vmatprep.subr.bf16.mxu0 0
        %1101 = vmatpush2.bf16.xpose.msra.mxu0 0
        %1102 = vmatprep.subr.bf16.mxu0 0
        %1103 = vmatpush2.bf16.xpose.msra.mxu0 0
        %1104 = vmatprep.subr.bf16.mxu0 0
        %1105 = vmatpush2.bf16.xpose.msra.mxu0 0
        %1106 = vmatprep.subr.bf16.mxu0 0
        %1107 = vmatpush2.bf16.xpose.msra.mxu0 0
        %1108 = vmatprep.subr.bf16.mxu0 0
        %1109 = vmatpush2.bf16.xpose.msra.mxu0 0
        %1110 = vmatprep.subr.bf16.mxu0 0
        %1111 = vmatpush2.bf16.xpose.msra.mxu0 0
        %1112 = vmatprep.subr.bf16.mxu0 0
        %1113 = vmatpush2.bf16.xpose.msra.mxu0 0
        %1114 = vmatprep.mubr.bf16.mxu0 0
        %1115 = vmatmul.mubr.bf16.gmra.mxu0 %v1077
        %v1116 = vpop.f32.mrf.mxu0
        %v1117 = vadd.f32 0.0, %v1116
        %v1118 = vpop.f32.mrf.mxu0
        %v1119 = vpop.f32.mrf.mxu0
        %v1120 = vpop.f32.mrf.mxu0
        %1121 = vdwg.mxu0
        %v1122 = vpack.c.bf16 %v1117, %v1117
        %s1123 = scalar_lea.vmem %s522, 8 [#allocation10]
        %1124 = vst.msk [vmem:[%s1123] sm:$0xf] %vm897, %v1122
        %1125 = vrot.lane.b32.xlu0 %v787, 104
        %v1126 = vpop.permute.xlu0 %1125
        %1127 = vrot.lane.b32.xlu0 %v788, 104
        %v1128 = vpop.permute.xlu0 %1127
        %v1130 = vsel %vm791, %v1126, 0
        %v1133 = vsel %vm791, %v1128, 0
        %1135 = vmatprep.subr.bf16.mxu0 0
        %1136 = vmatpush1.bf16.xpose.msra.mxu0 0
        %1137 = vmatprep.subr.bf16.mxu0 0
        %1138 = vmatpush1.bf16.xpose.msra.mxu0 0
        %1139 = vmatprep.subr.bf16.mxu0 0
        %1140 = vmatpush1.bf16.xpose.msra.mxu0 0
        %1141 = vmatprep.subr.bf16.mxu0 0
        %1142 = vmatpush1.bf16.xpose.msra.mxu0 0
        %1143 = vmatprep.subr.bf16.mxu0 0
        %1144 = vmatpush1.bf16.xpose.msra.mxu0 0
        %1145 = vmatprep.subr.bf16.mxu0 0
        %1146 = vmatpush1.bf16.xpose.msra.mxu0 0
        %1147 = vmatprep.subr.bf16.mxu0 0
        %1148 = vmatpush1.bf16.xpose.msra.mxu0 0
        %1149 = vmatprep.subr.bf16.mxu0 0
        %1150 = vmatpush1.bf16.xpose.msra.mxu0 %v1133
        %1151 = vmatprep.subr.bf16.mxu0 0
        %1152 = vmatpush2.bf16.xpose.msra.mxu0 0
        %1153 = vmatprep.subr.bf16.mxu0 0
        %1154 = vmatpush2.bf16.xpose.msra.mxu0 0
        %1155 = vmatprep.subr.bf16.mxu0 0
        %1156 = vmatpush2.bf16.xpose.msra.mxu0 0
        %1157 = vmatprep.subr.bf16.mxu0 0
        %1158 = vmatpush2.bf16.xpose.msra.mxu0 0
        %1159 = vmatprep.subr.bf16.mxu0 0
        %1160 = vmatpush2.bf16.xpose.msra.mxu0 0
        %1161 = vmatprep.subr.bf16.mxu0 0
        %1162 = vmatpush2.bf16.xpose.msra.mxu0 0
        %1163 = vmatprep.subr.bf16.mxu0 0
        %1164 = vmatpush2.bf16.xpose.msra.mxu0 0
        %1165 = vmatprep.subr.bf16.mxu0 0
        %1166 = vmatpush2.bf16.xpose.msra.mxu0 0
        %1167 = vmatprep.mubr.bf16.mxu0 0
        %1168 = vmatmul.mubr.bf16.gmra.mxu0 %v1130
        %v1169 = vpop.f32.mrf.mxu0
        %v1170 = vadd.f32 0.0, %v1169
        %v1171 = vpop.f32.mrf.mxu0
        %v1172 = vpop.f32.mrf.mxu0
        %v1173 = vpop.f32.mrf.mxu0
        %1174 = vdwg.mxu0
        %v1175 = vsel %vm791, %v1170, -inf
        %1176 = vmax.xlane.f32.xlu0 %v1175
        %v1177 = vpop.xlane.xlu0 %1176
        %v1178 = vsub.f32 %v1170, %v1177
        %v1179 = vmul.f32 %v1178, 1.442695
        %v1180 = vpow.pop %v1179
        %v1181 = vsel %vm791, %v1180, 0.0
        %1182 = vadd.xlane.f32.xlu0 %v1181
        %v1183 = vpop.xlane.xlu0 %1182
        %v1184 = vrcp.pop %v1183
        %v1185 = vmul.f32 %v1180, %v1184
        %v1186 = vpack.c.bf16 %v1185, %v1185
        %v1188 = vrot.slane %v790, 4
        %v1190 = vsel %vm791, %v1188, 0
        %v1193 = vsel %vm791, %v1186, 0
        %1195 = vmatprep.subr.bf16.mxu0 0
        %1196 = vmatpush1.bf16.xpose.msra.mxu0 0
        %1197 = vmatprep.subr.bf16.mxu0 0
        %1198 = vmatpush1.bf16.xpose.msra.mxu0 0
        %1199 = vmatprep.subr.bf16.mxu0 0
        %1200 = vmatpush1.bf16.xpose.msra.mxu0 0
        %1201 = vmatprep.subr.bf16.mxu0 0
        %1202 = vmatpush1.bf16.xpose.msra.mxu0 0
        %1203 = vmatprep.subr.bf16.mxu0 0
        %1204 = vmatpush1.bf16.xpose.msra.mxu0 0
        %1205 = vmatprep.subr.bf16.mxu0 0
        %1206 = vmatpush1.bf16.xpose.msra.mxu0 0
        %1207 = vmatprep.subr.bf16.mxu0 0
        %1208 = vmatpush1.bf16.xpose.msra.mxu0 0
        %1209 = vmatprep.subr.bf16.mxu0 0
        %1210 = vmatpush1.bf16.xpose.msra.mxu0 %v1193
        %1211 = vmatprep.subr.bf16.mxu0 0
        %1212 = vmatpush2.bf16.xpose.msra.mxu0 0
        %1213 = vmatprep.subr.bf16.mxu0 0
        %1214 = vmatpush2.bf16.xpose.msra.mxu0 0
        %1215 = vmatprep.subr.bf16.mxu0 0
        %1216 = vmatpush2.bf16.xpose.msra.mxu0 0
        %1217 = vmatprep.subr.bf16.mxu0 0
        %1218 = vmatpush2.bf16.xpose.msra.mxu0 0
        %1219 = vmatprep.subr.bf16.mxu0 0
        %1220 = vmatpush2.bf16.xpose.msra.mxu0 0
        %1221 = vmatprep.subr.bf16.mxu0 0
        %1222 = vmatpush2.bf16.xpose.msra.mxu0 0
        %1223 = vmatprep.subr.bf16.mxu0 0
        %1224 = vmatpush2.bf16.xpose.msra.mxu0 0
        %1225 = vmatprep.subr.bf16.mxu0 0
        %1226 = vmatpush2.bf16.xpose.msra.mxu0 0
        %1227 = vmatprep.mubr.bf16.mxu0 0
        %1228 = vmatmul.mubr.bf16.gmra.mxu0 %v1190
        %v1229 = vpop.f32.mrf.mxu0
        %v1230 = vadd.f32 0.0, %v1229
        %v1231 = vpop.f32.mrf.mxu0
        %v1232 = vpop.f32.mrf.mxu0
        %v1233 = vpop.f32.mrf.mxu0
        %1234 = vdwg.mxu0
        %v1235 = vpack.c.bf16 %v1230, %v1230
        %s1236 = scalar_lea.vmem %s522, 12 [#allocation10]
        %1237 = vst.msk [vmem:[%s1236] sm:$0xf] %vm897, %v1235
        %s1238 = sand.u32 %s286, 1
        %s1239 = scalar_lea.sflag [#allocation4], %s1238
        %s1240 = sand.u32 %s286, 1
        %s1241 = smul.addr %s1240, 16
        %s1242 = scalar_lea.vmem [#allocation10], %s1241
        // Predicated region
        $region73: #{tpu_custom_call.1} parent=55 // pred_check
          %p1243 = pneg %p296
        $region74: #{tpu_custom_call.1} parent=55 // pred_check_branch
          %1245 = sbr.rel (%p1243) target = $region76
        $region75: #{tpu_custom_call.1} parent=55 // pred_region
          %s1246 = smul.u32 4, %s35
          %s1248 = ssub.s32 256, 256
          %1249 = vsyncadd %s1239, %s1248
          %s1250 = smul.addr %s34, 4
          %s1251 = sadd.s32 %s1246, %s1250
          %s1252 = smul.addr %s1251, 64
          %s1253 = scalar_lea.hbm %s9, %s1252
          %s1254 = sshll.u32 %s1242, 4
          %s1255 = int_to_ptr.vmem [resolvable:$true] %s1254
          %1260 = dma.vmem_to_hbm [thread:$0]  %s1255, 256, %s1253, %s1239, 64, 64, 4
        $region76: #{tpu_custom_call.1} parent=55 // pred_fallthru
          _
      $region56: #{tpu_custom_call.1} parent=5 // pred_fallthru
        _
      %p1261 = scmp.le.s32.totalorder 2, %s25
      // Predicated region
      $region77: #{tpu_custom_call.1} parent=5 // pred_check
        %p1262 = pneg %p1261
      $region78: #{tpu_custom_call.1} parent=5 // pred_check_branch
        %1264 = sbr.rel (%p1262) target = $region80
      $region79: #{tpu_custom_call.1} parent=5 // pred_region
        %s1265 = ssub.s32 %s25, 2
        // Predicated region
        $region81: #{tpu_custom_call.1} parent=79 // pred_check
          %p1266 = pneg %p302
        $region82: #{tpu_custom_call.1} parent=79 // pred_check_branch
          %1268 = sbr.rel (%p1266) target = $region84
        $region83: #{tpu_custom_call.1} parent=79 // pred_region
          %s1269 = sand.u32 %s287, 1
          %s1270 = scalar_lea.sflag [#allocation4], %s1269
          %s1271 = sand.u32 %s287, 1
          %s1272 = smul.addr %s1271, 16
          %s1273 = scalar_lea.vmem [#allocation10], %s1272
          %1274 = dma.done %s1270, 256
        $region84: #{tpu_custom_call.1} parent=79 // pred_fallthru
          _
      $region80: #{tpu_custom_call.1} parent=5 // pred_fallthru
        _
    $region6: #{tpu_custom_call.1} parent=1 // loop_footer
      %s29 = sadd.s32 1, %s25
    $region7: #{tpu_custom_call.1} parent=1 // loop_footer_branch
      %24 = sbr.rel target = $region3
    $region8: #{tpu_custom_call.1} parent=1 // loop_exit
      _
    %1275 = vsyncpa [#allocation3], 1
    %s1276 = scalar_lea.sflag [#allocation3], 1
    %1277 = vsyncpa %s1276, 1
    %1278 = vsyncpa [#allocation6], 1
    %s1279 = scalar_lea.sflag [#allocation6], 1
    %1280 = vsyncpa %s1279, 1
    %1281 = vsyncpa [#allocation9], 1
    %1282 = vsyncpa [#allocation4], 1
    %s1283 = scalar_lea.sflag [#allocation4], 1
    %1284 = vsyncpa %s1283, 1

</llo_original>
